<compile_context>
chip_gen: v7x
topology: tpu7x:2x2x1
jax: 0.10.0
libtpu: 0.0.40
codegen_flags: <defaults>
</compile_context>

<pallas_src>
import math
import functools

import jax
import jax.numpy as jnp
from jax.experimental import pallas as pl
from jax.experimental.pallas import tpu as pltpu


# ---------------------------------------------------------------------------
# Activations
# ---------------------------------------------------------------------------
def _relu(x):
    return jnp.maximum(x, 0.0)


def _softplus_beta100(x):
    # nn.Softplus(beta=100) with torch's threshold=20/beta switch.  The exp
    # argument is clamped so the non-selected branch never produces inf/nan.
    beta = 100.0
    bx = beta * x
    return jnp.where(bx > 20.0, x, jnp.log1p(jnp.exp(jnp.minimum(bx, 20.0))) / beta)


def _identity(x):
    return x


_OUTPUT_ACTS = {
    "none": _identity,
    "relu": _relu,
    "sigmoid": jax.nn.sigmoid,
    "tanh": jnp.tanh,
}


# ---------------------------------------------------------------------------
# Kernel (lane-major fused CompositeEncoding)
#   refs = (x_ref, w0, b0, w1, b1, ..., out_ref)
#   x_ref   : (dim_in, tile_n)          -- batch rides the 128-lane axis
#   w_l     : (out_l, in_l)             -- torch Linear orientation, full block
#   b_l     : (out_l, 1)
#   out_ref : (n_out_total, tile_n)     -- rows [0:dim_in] = xyz (if include_xyz),
#                                          rows [dim_in:]  = encoding(x)
# ---------------------------------------------------------------------------
def _composite_kernel(*refs, n_layers, include_xyz, xyz_scale, xyz_offset,
                      hidden_act, output_act):
    x_ref = refs[0]
    out_ref = refs[-1]
    wb = refs[1:-1]

    x = x_ref[...].astype(jnp.float32)          # (dim_in, tile_n), f32 math
    dim_in, tile_n = x.shape

    # ---- layer 0: K = dim_in (tiny) -> VPU broadcast-FMAs, stays off the MXU.
    # Splats are hoisted (computed exactly once each; JAX does not CSE
    # broadcast_in_dim) and the bias is folded into the accumulator init.
    w0 = wb[0][...].astype(jnp.float32)         # (h0, dim_in)
    b0 = wb[1][...].astype(jnp.float32)         # (h0, 1)
    h0 = w0.shape[0]
    acc = jnp.broadcast_to(b0, (h0, tile_n))
    for k in range(dim_in):
        wk = jnp.broadcast_to(w0[:, k:k + 1], (h0, tile_n))   # lane splat (once)
        xk = jnp.broadcast_to(x[k:k + 1, :], (h0, tile_n))    # sublane splat (once)
        acc = acc + wk * xk
    h = hidden_act(acc) if n_layers > 1 else output_act(acc)

    # ---- layers 1..L-1: native bf16 MXU operands, f32 accumulation.
    for l in range(1, n_layers):
        w = wb[2 * l][...].astype(jnp.bfloat16)          # (out_l, in_l) bf16
        b = wb[2 * l + 1][...].astype(jnp.float32)       # (out_l, 1)  f32
        h = jnp.dot(w, h.astype(jnp.bfloat16),
                    preferred_element_type=jnp.float32) + b
        h = hidden_act(h) if l < n_layers - 1 else output_act(h)

    # ---- single fused, lane-dense output slab.
    if include_xyz:
        out_ref[0:dim_in, :] = (x * xyz_scale + xyz_offset).astype(out_ref.dtype)
        out_ref[dim_in:, :] = h.astype(out_ref.dtype)
    else:
        out_ref[...] = h.astype(out_ref.dtype)


# ---------------------------------------------------------------------------
# Wrapper
# ---------------------------------------------------------------------------
def composite_encoding_forward(x, weights, biases, *, include_xyz=True,
                               xyz_scale=1.0, xyz_offset=0.0,
                               sphere_init=False, output_activation="none",
                               tile_n=8192, out_dtype=None, lane_major_io=False):
    """CompositeEncoding forward.

    x       : (N, dim_in) array (f32 or bf16); if lane_major_io, (dim_in, N).
    weights : list of (out_l, in_l) arrays (torch Linear orientation).
    biases  : list of (out_l, 1) arrays.
    out_dtype : output dtype; default x.dtype (pass jnp.bfloat16 to halve the
                output HBM stream; in-kernel math stays f32).
    Returns (N, int(include_xyz)*dim_in + enc_out) matching
    torch.cat([x*xyz_scale + xyz_offset, encoding(x)], -1) (or encoding(x));
    if lane_major_io, the transposed (n_out, N) lane-major layout is returned
    with zero boundary layout passes.
    """
    if lane_major_io:
        dim_in, N = x.shape
        x_lm = x                                  # already (dim_in, N)
    else:
        N, dim_in = x.shape
        x_lm = x.T                                # single boundary transpose

    n_layers = len(weights)
    enc_out = int(weights[-1].shape[0])
    assert weights[0].shape[1] == dim_in
    n_out_total = (dim_in if include_xyz else 0) + enc_out
    out_dtype = jnp.dtype(out_dtype) if out_dtype is not None else x.dtype

    hidden_act = _softplus_beta100 if sphere_init else _relu
    output_act = _OUTPUT_ACTS[output_activation]

    # --- tile size: big tiles amortize per-step overhead (v5e/v6e), but keep
    # at least 2 grid steps when N allows so both v7x TensorCores are used.
    lane = 128
    tile_n = int(pl.cdiv(int(tile_n), lane) * lane)
    cap = int(pl.cdiv(N, 2 * lane) * lane)        # >=2 steps whenever N > 128
    tile_n = max(lane, min(tile_n, cap))
    grid = (pl.cdiv(N, tile_n),)                  # ragged last tile handled by Pallas

    in_specs = [pl.BlockSpec((dim_in, tile_n), lambda i: (0, i))]
    flat_params = []
    for w, b in zip(weights, biases):
        # Full-extent blocks with a constant index_map: the few-KB parameter
        # blocks are only fetched when their block index changes, i.e. once.
        in_specs.append(pl.BlockSpec(w.shape, lambda i: (0, 0)))
        in_specs.append(pl.BlockSpec(b.shape, lambda i: (0, 0)))
        flat_params += [w, b]

    out_shape = jax.ShapeDtypeStruct((n_out_total, N), out_dtype)
    out_specs = pl.BlockSpec((n_out_total, tile_n), lambda i: (0, i))

    # Advisory cost estimate (HBM traffic + MXU flops + EUP transcendentals).
    dims = [dim_in] + [int(w.shape[0]) for w in weights]
    mm_flops = 2 * N * sum(dims[i] * dims[i + 1] for i in range(len(dims) - 1))
    transcendentals = 2 * N * sum(dims[1:-1]) if sphere_init else 0
    bytes_accessed = (N * dim_in * x.dtype.itemsize
                      + N * n_out_total * out_dtype.itemsize
                      + sum(int(p.size) * p.dtype.itemsize for p in flat_params))
    cost = pl.CostEstimate(flops=int(mm_flops), transcendentals=int(transcendentals),
                           bytes_accessed=int(bytes_accessed))

    kernel = functools.partial(
        _composite_kernel, n_layers=n_layers, include_xyz=include_xyz,
        xyz_scale=float(xyz_scale), xyz_offset=float(xyz_offset),
        hidden_act=hidden_act, output_act=output_act)

    result = pl.pallas_call(
        kernel,
        out_shape=out_shape,
        grid_spec=pltpu.PrefetchScalarGridSpec(
            num_scalar_prefetch=0,
            grid=grid,
            in_specs=in_specs,
            out_specs=out_specs,
        ),
        compiler_params=pltpu.CompilerParams(
            dimension_semantics=("parallel",),
        ),
        cost_estimate=cost,
    )(x_lm, *flat_params)

    if lane_major_io:
        return result
    return result.T                               # single return-path transpose


# ---------------------------------------------------------------------------
# Deterministic parameter init (VanillaMLP.make_linear defaults:
# kaiming_uniform_(nonlinearity='relu') weights, zero biases).
# ---------------------------------------------------------------------------
def init_composite_mlp_params(key, dim_in, enc_out, n_neurons, n_hidden_layers,
                              weight_dtype=jnp.bfloat16):
    dims = [dim_in] + [n_neurons] * n_hidden_layers + [enc_out]
    weights, biases = [], []
    for l in range(len(dims) - 1):
        fan_in, fan_out = dims[l], dims[l + 1]
        key, sub = jax.random.split(key)
        bound = math.sqrt(2.0) * math.sqrt(3.0 / fan_in)  # kaiming_uniform, gain=sqrt(2)
        w = jax.random.uniform(sub, (fan_out, fan_in), jnp.float32, -bound, bound)
        weights.append(w.astype(weight_dtype))             # bf16 params in HBM
        biases.append(jnp.zeros((fan_out, 1), jnp.float32))
    return weights, biases


if __name__ == "__main__":
    dim_in, enc_dim = 3, 4
    n_neurons, n_hidden_layers = 32, 2
    include_xyz, xyz_scale, xyz_offset = True, 2.0, -1.0
    N = 3000   # deliberately NOT a multiple of 128 or the tile size (ragged tail)

    key = jax.random.PRNGKey(0)
    key, xkey = jax.random.split(key)
    x = jax.random.normal(xkey, (N, dim_in), jnp.float32)

    weights, biases = init_composite_mlp_params(key, dim_in, enc_dim,
                                                n_neurons, n_hidden_layers)

    out = composite_encoding_forward(
        x, weights, biases, include_xyz=include_xyz, xyz_scale=xyz_scale,
        xyz_offset=xyz_offset, sphere_init=False, output_activation="none")
    out = jax.block_until_ready(out)

    out_noxyz = composite_encoding_forward(
        x, weights, biases, include_xyz=False, sphere_init=False,
        output_activation="none")
    out_noxyz = jax.block_until_ready(out_noxyz)

    # Pure-JAX reference with identical rounding: bf16 weights; bf16 MXU
    # operands for layers >= 1; f32 accumulation and activations.
    h = x.astype(jnp.float32)
    for l, (w, b) in enumerate(zip(weights, biases)):
        if l > 0:
            h = h.astype(jnp.bfloat16).astype(jnp.float32)
        h = h @ w.astype(jnp.float32).T + b.astype(jnp.float32)[:, 0]
        if l < len(weights) - 1:
            h = jnp.maximum(h, 0.0)
    ref = jnp.concatenate([x * xyz_scale + xyz_offset, h], axis=-1)

    n_output_dims = int(include_xyz) * dim_in + enc_dim   # CompositeEncoding attr
    assert out.shape == (N, n_output_dims)
    assert out_noxyz.shape == (N, enc_dim)
    err_full = float(jnp.max(jnp.abs(out - ref)))
    err_enc = float(jnp.max(jnp.abs(out_noxyz - h)))
    assert err_full < 5e-4, err_full
    assert err_enc < 5e-4, err_enc

    # TODO(synk): update_step(epoch, global_step) is a training-schedule hook with
    # no forward compute; nothing to translate to a kernel.
    print("KERNEL_OK")
</pallas_src>

<mosaic_0001>
module attributes {stable_mosaic.version = 11 : i64} {
  func.func @_composite_kernel(%arg0: i32, %arg1: memref<3x1536xf32, #tpu.memory_space<vmem>>, %arg2: memref<32x3xbf16, #tpu.memory_space<vmem>>, %arg3: memref<32x1xf32, #tpu.memory_space<vmem>>, %arg4: memref<32x32xbf16, #tpu.memory_space<vmem>>, %arg5: memref<32x1xf32, #tpu.memory_space<vmem>>, %arg6: memref<4x32xbf16, #tpu.memory_space<vmem>>, %arg7: memref<4x1xf32, #tpu.memory_space<vmem>>, %arg8: memref<7x1536xf32, #tpu.memory_space<vmem>>) attributes {dimension_semantics = [#tpu.dimension_semantics<parallel>], iteration_bounds = array<i64: 2>, scalar_prefetch = 0 : i64, scratch_operands = 0 : i64, tpu.core_type = #tpu.core_type<tc>, window_params = [{transform_indices = @transform_0, window_bounds = array<i64: 3, 1536>}, {pipeline_mode = #tpu.pipeline_mode<synchronous>, transform_indices = @transform_1, window_bounds = array<i64: 32, 3>}, {pipeline_mode = #tpu.pipeline_mode<synchronous>, transform_indices = @transform_2, window_bounds = array<i64: 32, 1>}, {pipeline_mode = #tpu.pipeline_mode<synchronous>, transform_indices = @transform_3, window_bounds = array<i64: 32, 32>}, {pipeline_mode = #tpu.pipeline_mode<synchronous>, transform_indices = @transform_4, window_bounds = array<i64: 32, 1>}, {pipeline_mode = #tpu.pipeline_mode<synchronous>, transform_indices = @transform_5, window_bounds = array<i64: 4, 32>}, {pipeline_mode = #tpu.pipeline_mode<synchronous>, transform_indices = @transform_6, window_bounds = array<i64: 4, 1>}, {transform_indices = @transform_7, window_bounds = array<i64: 7, 1536>}]} {
    %c0 = arith.constant 0 : index
    %c0_0 = arith.constant 0 : index
    %0 = vector.load %arg1[%c0, %c0_0] : memref<3x1536xf32, #tpu.memory_space<vmem>>, vector<3x1536xf32>
    %c0_1 = arith.constant 0 : index
    %c0_2 = arith.constant 0 : index
    %1 = vector.load %arg2[%c0_1, %c0_2] : memref<32x3xbf16, #tpu.memory_space<vmem>>, vector<32x3xbf16>
    %2 = arith.extf %1 : vector<32x3xbf16> to vector<32x3xf32>
    %c0_3 = arith.constant 0 : index
    %c0_4 = arith.constant 0 : index
    %3 = vector.load %arg3[%c0_3, %c0_4] : memref<32x1xf32, #tpu.memory_space<vmem>>, vector<32x1xf32>
    %4 = vector.shape_cast %3 : vector<32x1xf32> to vector<32x1xf32>
    %5 = vector.broadcast %4 : vector<32x1xf32> to vector<32x1536xf32>
    %6 = vector.extract_strided_slice %2 {offsets = [0, 0], sizes = [32, 1], strides = [1, 1]} : vector<32x3xf32> to vector<32x1xf32>
    %7 = vector.shape_cast %6 : vector<32x1xf32> to vector<32x1xf32>
    %8 = vector.broadcast %7 : vector<32x1xf32> to vector<32x1536xf32>
    %9 = vector.extract_strided_slice %0 {offsets = [0, 0], sizes = [1, 1536], strides = [1, 1]} : vector<3x1536xf32> to vector<1x1536xf32>
    %10 = vector.shape_cast %9 : vector<1x1536xf32> to vector<1x1536xf32>
    %11 = vector.broadcast %10 : vector<1x1536xf32> to vector<32x1536xf32>
    %12 = arith.mulf %8, %11 : vector<32x1536xf32>
    %13 = arith.addf %5, %12 : vector<32x1536xf32>
    %14 = vector.extract_strided_slice %2 {offsets = [0, 1], sizes = [32, 1], strides = [1, 1]} : vector<32x3xf32> to vector<32x1xf32>
    %15 = vector.shape_cast %14 : vector<32x1xf32> to vector<32x1xf32>
    %16 = vector.broadcast %15 : vector<32x1xf32> to vector<32x1536xf32>
    %17 = vector.extract_strided_slice %0 {offsets = [1, 0], sizes = [1, 1536], strides = [1, 1]} : vector<3x1536xf32> to vector<1x1536xf32>
    %18 = vector.shape_cast %17 : vector<1x1536xf32> to vector<1x1536xf32>
    %19 = vector.broadcast %18 : vector<1x1536xf32> to vector<32x1536xf32>
    %20 = arith.mulf %16, %19 : vector<32x1536xf32>
    %21 = arith.addf %13, %20 : vector<32x1536xf32>
    %22 = vector.extract_strided_slice %2 {offsets = [0, 2], sizes = [32, 1], strides = [1, 1]} : vector<32x3xf32> to vector<32x1xf32>
    %23 = vector.shape_cast %22 : vector<32x1xf32> to vector<32x1xf32>
    %24 = vector.broadcast %23 : vector<32x1xf32> to vector<32x1536xf32>
    %25 = vector.extract_strided_slice %0 {offsets = [2, 0], sizes = [1, 1536], strides = [1, 1]} : vector<3x1536xf32> to vector<1x1536xf32>
    %26 = vector.shape_cast %25 : vector<1x1536xf32> to vector<1x1536xf32>
    %27 = vector.broadcast %26 : vector<1x1536xf32> to vector<32x1536xf32>
    %28 = arith.mulf %24, %27 : vector<32x1536xf32>
    %29 = arith.addf %21, %28 : vector<32x1536xf32>
    %cst = arith.constant 0.000000e+00 : f32
    %30 = vector.broadcast %cst : f32 to vector<32x1536xf32>
    %31 = arith.maximumf %29, %30 : vector<32x1536xf32>
    %c0_5 = arith.constant 0 : index
    %c0_6 = arith.constant 0 : index
    %32 = vector.load %arg4[%c0_5, %c0_6] : memref<32x32xbf16, #tpu.memory_space<vmem>>, vector<32x32xbf16>
    %c0_7 = arith.constant 0 : index
    %c0_8 = arith.constant 0 : index
    %33 = vector.load %arg5[%c0_7, %c0_8] : memref<32x1xf32, #tpu.memory_space<vmem>>, vector<32x1xf32>
    %34 = arith.truncf %31 : vector<32x1536xf32> to vector<32x1536xbf16>
    %cst_9 = arith.constant dense<0.000000e+00> : vector<32x1536xf32>
    %35 = tpu.matmul %32, %34, %cst_9 {dimension_numbers = #tpu.dot_dimension_numbers<[1], [0], [0], [1], [0, 0, 1, 1], [], []>} : vector<32x32xbf16>, vector<32x1536xbf16>, vector<32x1536xf32> -> vector<32x1536xf32>
    %36 = vector.broadcast %33 : vector<32x1xf32> to vector<32x1536xf32>
    %37 = arith.addf %35, %36 : vector<32x1536xf32>
    %cst_10 = arith.constant 0.000000e+00 : f32
    %38 = vector.broadcast %cst_10 : f32 to vector<32x1536xf32>
    %39 = arith.maximumf %37, %38 : vector<32x1536xf32>
    %c0_11 = arith.constant 0 : index
    %c0_12 = arith.constant 0 : index
    %40 = vector.load %arg6[%c0_11, %c0_12] : memref<4x32xbf16, #tpu.memory_space<vmem>>, vector<4x32xbf16>
    %c0_13 = arith.constant 0 : index
    %c0_14 = arith.constant 0 : index
    %41 = vector.load %arg7[%c0_13, %c0_14] : memref<4x1xf32, #tpu.memory_space<vmem>>, vector<4x1xf32>
    %42 = arith.truncf %39 : vector<32x1536xf32> to vector<32x1536xbf16>
    %cst_15 = arith.constant dense<0.000000e+00> : vector<4x1536xf32>
    %43 = tpu.matmul %40, %42, %cst_15 {dimension_numbers = #tpu.dot_dimension_numbers<[1], [0], [0], [1], [0, 0, 1, 1], [], []>} : vector<4x32xbf16>, vector<32x1536xbf16>, vector<4x1536xf32> -> vector<4x1536xf32>
    %44 = vector.broadcast %41 : vector<4x1xf32> to vector<4x1536xf32>
    %45 = arith.addf %43, %44 : vector<4x1536xf32>
    %cst_16 = arith.constant 2.000000e+00 : f32
    %46 = vector.broadcast %cst_16 : f32 to vector<3x1536xf32>
    %47 = arith.mulf %0, %46 : vector<3x1536xf32>
    %cst_17 = arith.constant -1.000000e+00 : f32
    %48 = vector.broadcast %cst_17 : f32 to vector<3x1536xf32>
    %49 = arith.addf %47, %48 : vector<3x1536xf32>
    %c0_18 = arith.constant 0 : index
    %c0_19 = arith.constant 0 : index
    %50 = vector.load %arg8[%c0_18, %c0_19] : memref<7x1536xf32, #tpu.memory_space<vmem>>, vector<3x1536xf32>
    tpu.vector_store %arg8[%c0_18, %c0_19], %49 {strides = array<i32>} : memref<7x1536xf32, #tpu.memory_space<vmem>>, vector<3x1536xf32>,
    %c3 = arith.constant 3 : index
    %c0_20 = arith.constant 0 : index
    %51 = vector.load %arg8[%c3, %c0_20] : memref<7x1536xf32, #tpu.memory_space<vmem>>, vector<4x1536xf32>
    tpu.vector_store %arg8[%c3, %c0_20], %45 {strides = array<i32>} : memref<7x1536xf32, #tpu.memory_space<vmem>>, vector<4x1536xf32>,
    return
  }
  func.func @transform_0(%arg0: i32) -> (i32, i32) {
    %c0_i32 = arith.constant 0 : i32
    %c0_i32_0 = arith.constant 0 : i32
    return %c0_i32, %arg0 : i32, i32
  }
  func.func @transform_1(%arg0: i32) -> (i32, i32) {
    %c0_i32 = arith.constant 0 : i32
    %c0_i32_0 = arith.constant 0 : i32
    %c0_i32_1 = arith.constant 0 : i32
    return %c0_i32, %c0_i32_0 : i32, i32
  }
  func.func @transform_2(%arg0: i32) -> (i32, i32) {
    %c0_i32 = arith.constant 0 : i32
    %c0_i32_0 = arith.constant 0 : i32
    %c0_i32_1 = arith.constant 0 : i32
    return %c0_i32, %c0_i32_0 : i32, i32
  }
  func.func @transform_3(%arg0: i32) -> (i32, i32) {
    %c0_i32 = arith.constant 0 : i32
    %c0_i32_0 = arith.constant 0 : i32
    %c0_i32_1 = arith.constant 0 : i32
    return %c0_i32, %c0_i32_0 : i32, i32
  }
  func.func @transform_4(%arg0: i32) -> (i32, i32) {
    %c0_i32 = arith.constant 0 : i32
    %c0_i32_0 = arith.constant 0 : i32
    %c0_i32_1 = arith.constant 0 : i32
    return %c0_i32, %c0_i32_0 : i32, i32
  }
  func.func @transform_5(%arg0: i32) -> (i32, i32) {
    %c0_i32 = arith.constant 0 : i32
    %c0_i32_0 = arith.constant 0 : i32
    %c0_i32_1 = arith.constant 0 : i32
    return %c0_i32, %c0_i32_0 : i32, i32
  }
  func.func @transform_6(%arg0: i32) -> (i32, i32) {
    %c0_i32 = arith.constant 0 : i32
    %c0_i32_0 = arith.constant 0 : i32
    %c0_i32_1 = arith.constant 0 : i32
    return %c0_i32, %c0_i32_0 : i32, i32
  }
  func.func @transform_7(%arg0: i32) -> (i32, i32) {
    %c0_i32 = arith.constant 0 : i32
    %c0_i32_0 = arith.constant 0 : i32
    return %c0_i32, %arg0 : i32, i32
  }
}

</mosaic_0001>

<llo_original>
// kernel: tpu_custom_call.1
$region0: #{tpu_custom_call.1}
  #allocation0 [shape = 'u32[]', space=smem, size = 0x4, offset = 0x4, fixed_abs, tag = 'smem constant byte address 0x4 - core index']
  #allocation1 [shape = 'u32[144,128]{1,0:T(1,128)}', space=vmem, size = 0x12000, scoped, tag = 'internal scratch']
  %s0 = inlined_call_operand.hbm [shape: f32[3,3000], index: 0, kind: input, shape index: {}]
  %s1 = inlined_call_operand.vmem [shape: bf16[32,3], index: 1, kind: input, shape index: {}]
  %s2 = inlined_call_operand.vmem [shape: f32[32,1], index: 2, kind: input, shape index: {}]
  %s3 = inlined_call_operand.vmem [shape: bf16[32,32], index: 3, kind: input, shape index: {}]
  %s4 = inlined_call_operand.vmem [shape: f32[32,1], index: 4, kind: input, shape index: {}]
  %s5 = inlined_call_operand.vmem [shape: bf16[4,32], index: 5, kind: input, shape index: {}]
  %s6 = inlined_call_operand.vmem [shape: f32[4,1], index: 6, kind: input, shape index: {}]
  %s7 = inlined_call_operand.hbm [shape: f32[7,3000], index: 7, kind: output, shape index: {}]
  %s8 = sld [smem:[#allocation0]]
  $region65: #{tpu_custom_call.1} parent=0
    _
  %s10 = ssub.s32 1, %s8
  %s11 = scalar_select 0, %s10, %s8
  $region1: #{tpu_custom_call.1} parent=0
    #allocation2 [shape = 'u8[49152]{0}', space=vmem, size = 0xc000, scoped, tag = 'input window, operand 0']
    #allocation3 [shape = 's32[2]{0}', space=sflag, size = 0x8, scoped, tag = 'scoped memory for tpu_custom_call.1']
    #allocation4 [shape = 's32[2]{0}', space=sflag, size = 0x8, scoped, tag = 'scoped memory for tpu_custom_call.1']
    #allocation5 [shape = 'u8[98304]{0}', space=vmem, size = 0x18000, scoped, tag = 'output window, operand 0']
    %12 = vsyncpa [#allocation3], 0
    %s13 = scalar_lea.sflag [#allocation3], 1
    %14 = vsyncpa %s13, 0
    %15 = vsyncpa [#allocation4], 0
    %s16 = scalar_lea.sflag [#allocation4], 1
    %17 = vsyncpa %s16, 0
    loop: start=0, step=1, limit=4
    $region2: #{tpu_custom_call.1} parent=1 // loop_pre_header
      _
    $region3: #{tpu_custom_call.1} parent=1 // loop_header
      %s19 = sphi 0, %s23
      %p20 = scmp.ge.s32.totalorder %s19, 4
      %s29 = sphi 0, %s31
      %s32 = sphi 0, %s29
      %s33 = sphi 0, %s32
      %s49 = sphi 0, %s33
      %s53 = sphi 0, %s53
      %s55 = sphi 0, %s53
      %s56 = sphi 0, %s55
      %s70 = sphi 0, %s56
      %s74 = sphi 0, %s74
      %s76 = sphi 0, %s74
      %s77 = sphi 0, %s76
      %s91 = sphi 0, %s77
      %s95 = sphi 0, %s95
      %s97 = sphi 0, %s95
      %s98 = sphi 0, %s97
      %s112 = sphi 0, %s98
      %s116 = sphi 0, %s116
      %s118 = sphi 0, %s116
      %s119 = sphi 0, %s118
      %s133 = sphi 0, %s119
      %s137 = sphi 0, %s137
      %s139 = sphi 0, %s137
      %s140 = sphi 0, %s139
      %s154 = sphi 0, %s140
      %s158 = sphi 0, %s158
      %s160 = sphi 0, %s158
      %s161 = sphi 0, %s160
      %s175 = sphi 0, %s161
      %s181 = sphi 0, %s183
      %s184 = sphi 0, %s181
      %s185 = sphi 0, %s184
      %s201 = sphi 0, %s185
    $region4: #{tpu_custom_call.1} parent=1 // loop_header_branch
      %22 = sbr.rel (%p20) target = $region8
    $region5: #{tpu_custom_call.1} parent=1 // loop_body
      %s24 = ssub.s32 %s19, 1
      %s25 = ssub.s32 %s19, 2
      %s26 = sadd.s32 %s19, 1
      %s27 = ssub.s32 %s19, %s26
      %p28 = scmp.eq.s32.totalorder %s27, 0
      %s30 = sadd.s32 %s29, 1
      %s31 = scalar_select %p28, %s29, %s30
      %p34 = pneg %p28
      %p35 = scmp.eq.s32.totalorder %s19, 1
      %p36 = por %p34, %p35
      %p37 = scmp.ne.s32.totalorder %s29, %s32
      %p38 = scmp.eq.s32.totalorder %s19, 0
      %p39 = por %p37, %p38
      %p40 = scmp.ne.s32.totalorder %s29, %s32
      %p41 = scmp.eq.s32.totalorder %s24, 1
      %p42 = por %p40, %p41
      %p43 = scmp.ne.s32.totalorder %s32, %s33
      %p44 = scmp.eq.s32.totalorder %s24, 0
      %p45 = por %p43, %p44
      %p46 = scmp.ne.s32.totalorder %s32, %s33
      %p47 = scmp.eq.s32.totalorder %s25, 1
      %p48 = por %p46, %p47
      %p50 = scmp.ne.s32.totalorder %s33, %s49
      %p51 = scmp.eq.s32.totalorder %s25, 0
      %p52 = por %p50, %p51
      %s54 = sadd.s32 %s53, 1
      %p57 = scmp.eq.s32.totalorder %s19, 1
      %p58 = scmp.ne.s32.totalorder %s53, %s55
      %p59 = scmp.eq.s32.totalorder %s19, 0
      %p60 = por %p58, %p59
      %p61 = scmp.ne.s32.totalorder %s53, %s55
      %p62 = scmp.eq.s32.totalorder %s24, 1
      %p63 = por %p61, %p62
      %p64 = scmp.ne.s32.totalorder %s55, %s56
      %p65 = scmp.eq.s32.totalorder %s24, 0
      %p66 = por %p64, %p65
      %p67 = scmp.ne.s32.totalorder %s55, %s56
      %p68 = scmp.eq.s32.totalorder %s25, 1
      %p69 = por %p67, %p68
      %p71 = scmp.ne.s32.totalorder %s56, %s70
      %p72 = scmp.eq.s32.totalorder %s25, 0
      %p73 = por %p71, %p72
      %s75 = sadd.s32 %s74, 1
      %p78 = scmp.eq.s32.totalorder %s19, 1
      %p79 = scmp.ne.s32.totalorder %s74, %s76
      %p80 = scmp.eq.s32.totalorder %s19, 0
      %p81 = por %p79, %p80
      %p82 = scmp.ne.s32.totalorder %s74, %s76
      %p83 = scmp.eq.s32.totalorder %s24, 1
      %p84 = por %p82, %p83
      %p85 = scmp.ne.s32.totalorder %s76, %s77
      %p86 = scmp.eq.s32.totalorder %s24, 0
      %p87 = por %p85, %p86
      %p88 = scmp.ne.s32.totalorder %s76, %s77
      %p89 = scmp.eq.s32.totalorder %s25, 1
      %p90 = por %p88, %p89
      %p92 = scmp.ne.s32.totalorder %s77, %s91
      %p93 = scmp.eq.s32.totalorder %s25, 0
      %p94 = por %p92, %p93
      %s96 = sadd.s32 %s95, 1
      %p99 = scmp.eq.s32.totalorder %s19, 1
      %p100 = scmp.ne.s32.totalorder %s95, %s97
      %p101 = scmp.eq.s32.totalorder %s19, 0
      %p102 = por %p100, %p101
      %p103 = scmp.ne.s32.totalorder %s95, %s97
      %p104 = scmp.eq.s32.totalorder %s24, 1
      %p105 = por %p103, %p104
      %p106 = scmp.ne.s32.totalorder %s97, %s98
      %p107 = scmp.eq.s32.totalorder %s24, 0
      %p108 = por %p106, %p107
      %p109 = scmp.ne.s32.totalorder %s97, %s98
      %p110 = scmp.eq.s32.totalorder %s25, 1
      %p111 = por %p109, %p110
      %p113 = scmp.ne.s32.totalorder %s98, %s112
      %p114 = scmp.eq.s32.totalorder %s25, 0
      %p115 = por %p113, %p114
      %s117 = sadd.s32 %s116, 1
      %p120 = scmp.eq.s32.totalorder %s19, 1
      %p121 = scmp.ne.s32.totalorder %s116, %s118
      %p122 = scmp.eq.s32.totalorder %s19, 0
      %p123 = por %p121, %p122
      %p124 = scmp.ne.s32.totalorder %s116, %s118
      %p125 = scmp.eq.s32.totalorder %s24, 1
      %p126 = por %p124, %p125
      %p127 = scmp.ne.s32.totalorder %s118, %s119
      %p128 = scmp.eq.s32.totalorder %s24, 0
      %p129 = por %p127, %p128
      %p130 = scmp.ne.s32.totalorder %s118, %s119
      %p131 = scmp.eq.s32.totalorder %s25, 1
      %p132 = por %p130, %p131
      %p134 = scmp.ne.s32.totalorder %s119, %s133
      %p135 = scmp.eq.s32.totalorder %s25, 0
      %p136 = por %p134, %p135
      %s138 = sadd.s32 %s137, 1
      %p141 = scmp.eq.s32.totalorder %s19, 1
      %p142 = scmp.ne.s32.totalorder %s137, %s139
      %p143 = scmp.eq.s32.totalorder %s19, 0
      %p144 = por %p142, %p143
      %p145 = scmp.ne.s32.totalorder %s137, %s139
      %p146 = scmp.eq.s32.totalorder %s24, 1
      %p147 = por %p145, %p146
      %p148 = scmp.ne.s32.totalorder %s139, %s140
      %p149 = scmp.eq.s32.totalorder %s24, 0
      %p150 = por %p148, %p149
      %p151 = scmp.ne.s32.totalorder %s139, %s140
      %p152 = scmp.eq.s32.totalorder %s25, 1
      %p153 = por %p151, %p152
      %p155 = scmp.ne.s32.totalorder %s140, %s154
      %p156 = scmp.eq.s32.totalorder %s25, 0
      %p157 = por %p155, %p156
      %s159 = sadd.s32 %s158, 1
      %p162 = scmp.eq.s32.totalorder %s19, 1
      %p163 = scmp.ne.s32.totalorder %s158, %s160
      %p164 = scmp.eq.s32.totalorder %s19, 0
      %p165 = por %p163, %p164
      %p166 = scmp.ne.s32.totalorder %s158, %s160
      %p167 = scmp.eq.s32.totalorder %s24, 1
      %p168 = por %p166, %p167
      %p169 = scmp.ne.s32.totalorder %s160, %s161
      %p170 = scmp.eq.s32.totalorder %s24, 0
      %p171 = por %p169, %p170
      %p172 = scmp.ne.s32.totalorder %s160, %s161
      %p173 = scmp.eq.s32.totalorder %s25, 1
      %p174 = por %p172, %p173
      %p176 = scmp.ne.s32.totalorder %s161, %s175
      %p177 = scmp.eq.s32.totalorder %s25, 0
      %p178 = por %p176, %p177
      %s179 = ssub.s32 %s19, %s26
      %p180 = scmp.eq.s32.totalorder %s179, 0
      %s182 = sadd.s32 %s181, 1
      %s183 = scalar_select %p180, %s181, %s182
      %p186 = pneg %p180
      %p187 = scmp.eq.s32.totalorder %s19, 1
      %p188 = por %p186, %p187
      %p189 = scmp.ne.s32.totalorder %s181, %s184
      %p190 = scmp.eq.s32.totalorder %s19, 0
      %p191 = por %p189, %p190
      %p192 = scmp.ne.s32.totalorder %s181, %s184
      %p193 = scmp.eq.s32.totalorder %s24, 1
      %p194 = por %p192, %p193
      %p195 = scmp.ne.s32.totalorder %s184, %s185
      %p196 = scmp.eq.s32.totalorder %s24, 0
      %p197 = por %p195, %p196
      %p198 = scmp.ne.s32.totalorder %s184, %s185
      %p199 = scmp.eq.s32.totalorder %s25, 1
      %p200 = por %p198, %p199
      %p202 = scmp.ne.s32.totalorder %s185, %s201
      %p203 = scmp.eq.s32.totalorder %s25, 0
      %p204 = por %p202, %p203
      %p205 = scmp.le.s32.totalorder 1, %s19
      %p206 = scmp.lt.s32.totalorder %s19, 3
      %p207 = pnand %p205, %p206
      %p208 = pneg %p207
      // Predicated region
      $region9: #{tpu_custom_call.1} parent=5 // pred_check
        _
      $region10: #{tpu_custom_call.1} parent=5 // pred_check_branch
        %210 = sbr.rel (%p207) target = $region12
      $region11: #{tpu_custom_call.1} parent=5 // pred_region
        %s211 = ssub.s32 %s19, 1
        // Predicated region
        $region13: #{tpu_custom_call.1} parent=11 // pred_check
          %p212 = pneg %p66
        $region14: #{tpu_custom_call.1} parent=11 // pred_check_branch
          %214 = sbr.rel (%p212) target = $region16
        $region15: #{tpu_custom_call.1} parent=11 // pred_region
          _
        $region16: #{tpu_custom_call.1} parent=11 // pred_fallthru
          _
        // Predicated region
        $region17: #{tpu_custom_call.1} parent=11 // pred_check
          %p215 = pneg %p87
        $region18: #{tpu_custom_call.1} parent=11 // pred_check_branch
          %217 = sbr.rel (%p215) target = $region20
        $region19: #{tpu_custom_call.1} parent=11 // pred_region
          _
        $region20: #{tpu_custom_call.1} parent=11 // pred_fallthru
          _
        // Predicated region
        $region21: #{tpu_custom_call.1} parent=11 // pred_check
          %p218 = pneg %p108
        $region22: #{tpu_custom_call.1} parent=11 // pred_check_branch
          %220 = sbr.rel (%p218) target = $region24
        $region23: #{tpu_custom_call.1} parent=11 // pred_region
          _
        $region24: #{tpu_custom_call.1} parent=11 // pred_fallthru
          _
        // Predicated region
        $region25: #{tpu_custom_call.1} parent=11 // pred_check
          %p221 = pneg %p129
        $region26: #{tpu_custom_call.1} parent=11 // pred_check_branch
          %223 = sbr.rel (%p221) target = $region28
        $region27: #{tpu_custom_call.1} parent=11 // pred_region
          _
        $region28: #{tpu_custom_call.1} parent=11 // pred_fallthru
          _
        // Predicated region
        $region29: #{tpu_custom_call.1} parent=11 // pred_check
          %p224 = pneg %p150
        $region30: #{tpu_custom_call.1} parent=11 // pred_check_branch
          %226 = sbr.rel (%p224) target = $region32
        $region31: #{tpu_custom_call.1} parent=11 // pred_region
          _
        $region32: #{tpu_custom_call.1} parent=11 // pred_fallthru
          _
        // Predicated region
        $region33: #{tpu_custom_call.1} parent=11 // pred_check
          %p227 = pneg %p171
        $region34: #{tpu_custom_call.1} parent=11 // pred_check_branch
          %229 = sbr.rel (%p227) target = $region36
        $region35: #{tpu_custom_call.1} parent=11 // pred_region
          _
        $region36: #{tpu_custom_call.1} parent=11 // pred_fallthru
          _
      $region12: #{tpu_custom_call.1} parent=5 // pred_fallthru
        _
      %p230 = scmp.lt.s32.totalorder %s19, 2
      // Predicated region
      $region37: #{tpu_custom_call.1} parent=5 // pred_check
        %p231 = pneg %p230
      $region38: #{tpu_custom_call.1} parent=5 // pred_check_branch
        %233 = sbr.rel (%p231) target = $region40
      $region39: #{tpu_custom_call.1} parent=5 // pred_region
        // Predicated region
        $region41: #{tpu_custom_call.1} parent=39 // pred_check
          %p234 = pneg %p39
        $region42: #{tpu_custom_call.1} parent=39 // pred_check_branch
          %236 = sbr.rel (%p234) target = $region44
        $region43: #{tpu_custom_call.1} parent=39 // pred_region
          %s237 = sand.u32 %s29, 1
          %s238 = scalar_lea.sflag [#allocation3], %s237
          %s239 = sand.u32 %s29, 1
          %s240 = smul.addr %s239, 48
          %s241 = scalar_lea.vmem [#allocation2], %s240
          %s242 = smul.u32 12, %s19
          %s244 = ssub.s32 768, 768
          %245 = vsyncadd %s238, %s244
          %s246 = smul.addr %s242, 64
          %s247 = scalar_lea.hbm %s0, %s246
          %s249 = sshll.u32 %s241, 4
          %s250 = int_to_ptr.vmem [resolvable:$true] %s249
          %252 = dma.hbm_to_vmem [thread:$0]  %s247, 768, %s250, %s238
        $region44: #{tpu_custom_call.1} parent=39 // pred_fallthru
          _
      $region40: #{tpu_custom_call.1} parent=5 // pred_fallthru
        _
      %p253 = scmp.le.s32.totalorder 1, %s19
      %p254 = scmp.lt.s32.totalorder %s19, 3
      %p255 = pnand %p253, %p254
      %p256 = pneg %p255
      // Predicated region
      $region45: #{tpu_custom_call.1} parent=5 // pred_check
        _
      $region46: #{tpu_custom_call.1} parent=5 // pred_check_branch
        %258 = sbr.rel (%p255) target = $region48
      $region47: #{tpu_custom_call.1} parent=5 // pred_region
        %s259 = ssub.s32 %s19, 1
        %s260 = sand.u32 %s32, 1
        %s261 = scalar_lea.sflag [#allocation3], %s260
        %s262 = sand.u32 %s32, 1
        %s263 = smul.addr %s262, 48
        %s264 = scalar_lea.vmem [#allocation2], %s263
        // Predicated region
        $region49: #{tpu_custom_call.1} parent=47 // pred_check
          %p265 = pneg %p45
        $region50: #{tpu_custom_call.1} parent=47 // pred_check_branch
          %267 = sbr.rel (%p265) target = $region52
        $region51: #{tpu_custom_call.1} parent=47 // pred_region
          %268 = dma.done %s261, 768
        $region52: #{tpu_custom_call.1} parent=47 // pred_fallthru
          _
        %s269 = sand.u32 %s32, 1
        %s270 = scalar_lea.sflag [#allocation3], %s269
        %s271 = sand.u32 %s32, 1
        %s272 = smul.addr %s271, 48
        %s273 = scalar_lea.vmem [#allocation2], %s272
        %p274 = pneg %p45
        %p275 = pneg %p42
        %p276 = pneg %p66
        %p277 = pneg %p63
        %p278 = pneg %p87
        %p279 = pneg %p84
        %p280 = pneg %p108
        %p281 = pneg %p105
        %p282 = pneg %p129
        %p283 = pneg %p126
        %p284 = pneg %p150
        %p285 = pneg %p147
        %p286 = pneg %p171
        %p287 = pneg %p168
        %p288 = pneg %p197
        %p289 = pneg %p194
        %s290 = sand.u32 %s184, 1
        %s291 = scalar_lea.sflag [#allocation4], %s290
        %s292 = sand.u32 %s184, 1
        %s293 = smul.addr %s292, 96
        %s294 = scalar_lea.vmem [#allocation5], %s293
        %s295 = smul.u32 12, %s24
        %s296 = smul.u32 12, %s24
        %v298 = vld [vmem:[%s264] sm:$0x77]
        %v299 = vld [vmem:[%s264 + $0x8] sm:$0x77]
        %v300 = vld [vmem:[%s264 + $0x10] sm:$0x77]
        %v301 = vld [vmem:[%s264 + $0x18] sm:$0x77]
        %v302 = vld [vmem:[%s264 + $0x20] sm:$0x77]
        %v303 = vld [vmem:[%s264 + $0x28] sm:$0x77]
        %v304 = vld [vmem:[%s1] sm:$0xf]
        %v305 = vld [vmem:[%s1 + $0x4] sm:$0xf]
        %v306 = vld [vmem:[%s1 + $0x8] sm:$0xf]
        %v307 = vld [vmem:[%s1 + $0xc] sm:$0xf]
        %v308 = vunpack.c.l.bf16 %v304
        %v309 = vunpack.c.l.bf16 %v305
        %v310 = vunpack.c.l.bf16 %v306
        %v311 = vunpack.c.l.bf16 %v307
        %v312 = vld [vmem:[%s2] sm:$0xff]
        %v313 = vld [vmem:[%s2 + $0x8] sm:$0xff]
        %v314 = vld [vmem:[%s2 + $0x10] sm:$0xff]
        %v315 = vld [vmem:[%s2 + $0x18] sm:$0xff]
        %317 = vset.pattern.permute.xlu0 0
        %318 = vperm.xlu0 %317, %v312
        %v319 = vpop.permute.xlu0 %318
        %322 = vset.pattern.permute.xlu0 0
        %323 = vperm.xlu0 %322, %v313
        %v324 = vpop.permute.xlu0 %323
        %327 = vset.pattern.permute.xlu0 0
        %328 = vperm.xlu0 %327, %v314
        %v329 = vpop.permute.xlu0 %328
        %332 = vset.pattern.permute.xlu0 0
        %333 = vperm.xlu0 %332, %v315
        %v334 = vpop.permute.xlu0 %333
        %337 = vset.pattern.permute.xlu0 0
        %338 = vperm.xlu0 %337, %v308
        %v339 = vpop.permute.xlu0 %338
        %342 = vset.pattern.permute.xlu0 0
        %343 = vperm.xlu0 %342, %v309
        %v344 = vpop.permute.xlu0 %343
        %347 = vset.pattern.permute.xlu0 0
        %348 = vperm.xlu0 %347, %v310
        %v349 = vpop.permute.xlu0 %348
        %352 = vset.pattern.permute.xlu0 0
        %353 = vperm.xlu0 %352, %v311
        %v354 = vpop.permute.xlu0 %353
        %v362 = vlaneseq
        %v363 = vshrl.u32 %v362, 7
        %v364 = vsub.s32 0, %v363
        %v365 = vrot.slane %v298, %v364
        %v366 = vlaneseq
        %v367 = vshrl.u32 %v366, 7
        %v368 = vsub.s32 4, %v367
        %v369 = vrot.slane %v298, %v368
        %v370 = vlaneseq
        %v371 = vshrl.u32 %v370, 7
        %v372 = vsub.s32 0, %v371
        %v373 = vrot.slane %v299, %v372
        %v374 = vlaneseq
        %v375 = vshrl.u32 %v374, 7
        %v376 = vsub.s32 4, %v375
        %v377 = vrot.slane %v299, %v376
        %v378 = vlaneseq
        %v379 = vshrl.u32 %v378, 7
        %v380 = vsub.s32 0, %v379
        %v381 = vrot.slane %v300, %v380
        %v382 = vlaneseq
        %v383 = vshrl.u32 %v382, 7
        %v384 = vsub.s32 4, %v383
        %v385 = vrot.slane %v300, %v384
        %v386 = vlaneseq
        %v387 = vshrl.u32 %v386, 7
        %v388 = vsub.s32 0, %v387
        %v389 = vrot.slane %v301, %v388
        %v390 = vlaneseq
        %v391 = vshrl.u32 %v390, 7
        %v392 = vsub.s32 4, %v391
        %v393 = vrot.slane %v301, %v392
        %v394 = vlaneseq
        %v395 = vshrl.u32 %v394, 7
        %v396 = vsub.s32 0, %v395
        %v397 = vrot.slane %v302, %v396
        %v398 = vlaneseq
        %v399 = vshrl.u32 %v398, 7
        %v400 = vsub.s32 4, %v399
        %v401 = vrot.slane %v302, %v400
        %v402 = vlaneseq
        %v403 = vshrl.u32 %v402, 7
        %v404 = vsub.s32 0, %v403
        %v405 = vrot.slane %v303, %v404
        %v406 = vlaneseq
        %v407 = vshrl.u32 %v406, 7
        %v408 = vsub.s32 4, %v407
        %v409 = vrot.slane %v303, %v408
        %v422 = vlaneseq
        %v423 = vshrl.u32 %v422, 7
        %v424 = vsub.s32 0, %v423
        %v425 = vrot.slane %v365, %v424
        %v426 = vlaneseq
        %v427 = vshrl.u32 %v426, 7
        %v428 = vsub.s32 0, %v427
        %v429 = vrot.slane %v369, %v428
        %v430 = vlaneseq
        %v431 = vshrl.u32 %v430, 7
        %v432 = vsub.s32 0, %v431
        %v433 = vrot.slane %v373, %v432
        %v434 = vlaneseq
        %v435 = vshrl.u32 %v434, 7
        %v436 = vsub.s32 0, %v435
        %v437 = vrot.slane %v377, %v436
        %v438 = vlaneseq
        %v439 = vshrl.u32 %v438, 7
        %v440 = vsub.s32 0, %v439
        %v441 = vrot.slane %v381, %v440
        %v442 = vlaneseq
        %v443 = vshrl.u32 %v442, 7
        %v444 = vsub.s32 0, %v443
        %v445 = vrot.slane %v385, %v444
        %v446 = vlaneseq
        %v447 = vshrl.u32 %v446, 7
        %v448 = vsub.s32 0, %v447
        %v449 = vrot.slane %v389, %v448
        %v450 = vlaneseq
        %v451 = vshrl.u32 %v450, 7
        %v452 = vsub.s32 0, %v451
        %v453 = vrot.slane %v393, %v452
        %v454 = vlaneseq
        %v455 = vshrl.u32 %v454, 7
        %v456 = vsub.s32 0, %v455
        %v457 = vrot.slane %v397, %v456
        %v458 = vlaneseq
        %v459 = vshrl.u32 %v458, 7
        %v460 = vsub.s32 0, %v459
        %v461 = vrot.slane %v401, %v460
        %v462 = vlaneseq
        %v463 = vshrl.u32 %v462, 7
        %v464 = vsub.s32 0, %v463
        %v465 = vrot.slane %v405, %v464
        %v466 = vlaneseq
        %v467 = vshrl.u32 %v466, 7
        %v468 = vsub.s32 0, %v467
        %v469 = vrot.slane %v409, %v468
        %v470 = vmul.f32 %v339, %v425
        %v471 = vmul.f32 %v339, %v429
        %v472 = vmul.f32 %v339, %v433
        %v473 = vmul.f32 %v339, %v437
        %v474 = vmul.f32 %v339, %v441
        %v475 = vmul.f32 %v339, %v445
        %v476 = vmul.f32 %v339, %v449
        %v477 = vmul.f32 %v339, %v453
        %v478 = vmul.f32 %v339, %v457
        %v479 = vmul.f32 %v339, %v461
        %v480 = vmul.f32 %v339, %v465
        %v481 = vmul.f32 %v339, %v469
        %v482 = vmul.f32 %v344, %v425
        %v483 = vmul.f32 %v344, %v429
        %v484 = vmul.f32 %v344, %v433
        %v485 = vmul.f32 %v344, %v437
        %v486 = vmul.f32 %v344, %v441
        %v487 = vmul.f32 %v344, %v445
        %v488 = vmul.f32 %v344, %v449
        %v489 = vmul.f32 %v344, %v453
        %v490 = vmul.f32 %v344, %v457
        %v491 = vmul.f32 %v344, %v461
        %v492 = vmul.f32 %v344, %v465
        %v493 = vmul.f32 %v344, %v469
        %v494 = vmul.f32 %v349, %v425
        %v495 = vmul.f32 %v349, %v429
        %v496 = vmul.f32 %v349, %v433
        %v497 = vmul.f32 %v349, %v437
        %v498 = vmul.f32 %v349, %v441
        %v499 = vmul.f32 %v349, %v445
        %v500 = vmul.f32 %v349, %v449
        %v501 = vmul.f32 %v349, %v453
        %v502 = vmul.f32 %v349, %v457
        %v503 = vmul.f32 %v349, %v461
        %v504 = vmul.f32 %v349, %v465
        %v505 = vmul.f32 %v349, %v469
        %v506 = vmul.f32 %v354, %v425
        %v507 = vmul.f32 %v354, %v429
        %v508 = vmul.f32 %v354, %v433
        %v509 = vmul.f32 %v354, %v437
        %v510 = vmul.f32 %v354, %v441
        %v511 = vmul.f32 %v354, %v445
        %v512 = vmul.f32 %v354, %v449
        %v513 = vmul.f32 %v354, %v453
        %v514 = vmul.f32 %v354, %v457
        %v515 = vmul.f32 %v354, %v461
        %v516 = vmul.f32 %v354, %v465
        %v517 = vmul.f32 %v354, %v469
        %v518 = vadd.f32 %v319, %v470
        %v519 = vadd.f32 %v319, %v471
        %v520 = vadd.f32 %v319, %v472
        %v521 = vadd.f32 %v319, %v473
        %v522 = vadd.f32 %v319, %v474
        %v523 = vadd.f32 %v319, %v475
        %v524 = vadd.f32 %v319, %v476
        %v525 = vadd.f32 %v319, %v477
        %v526 = vadd.f32 %v319, %v478
        %v527 = vadd.f32 %v319, %v479
        %v528 = vadd.f32 %v319, %v480
        %v529 = vadd.f32 %v319, %v481
        %v530 = vadd.f32 %v324, %v482
        %v531 = vadd.f32 %v324, %v483
        %v532 = vadd.f32 %v324, %v484
        %v533 = vadd.f32 %v324, %v485
        %v534 = vadd.f32 %v324, %v486
        %v535 = vadd.f32 %v324, %v487
        %v536 = vadd.f32 %v324, %v488
        %v537 = vadd.f32 %v324, %v489
        %v538 = vadd.f32 %v324, %v490
        %v539 = vadd.f32 %v324, %v491
        %v540 = vadd.f32 %v324, %v492
        %v541 = vadd.f32 %v324, %v493
        %v542 = vadd.f32 %v329, %v494
        %v543 = vadd.f32 %v329, %v495
        %v544 = vadd.f32 %v329, %v496
        %v545 = vadd.f32 %v329, %v497
        %v546 = vadd.f32 %v329, %v498
        %v547 = vadd.f32 %v329, %v499
        %v548 = vadd.f32 %v329, %v500
        %v549 = vadd.f32 %v329, %v501
        %v550 = vadd.f32 %v329, %v502
        %v551 = vadd.f32 %v329, %v503
        %v552 = vadd.f32 %v329, %v504
        %v553 = vadd.f32 %v329, %v505
        %v554 = vadd.f32 %v334, %v506
        %v555 = vadd.f32 %v334, %v507
        %v556 = vadd.f32 %v334, %v508
        %v557 = vadd.f32 %v334, %v509
        %v558 = vadd.f32 %v334, %v510
        %v559 = vadd.f32 %v334, %v511
        %v560 = vadd.f32 %v334, %v512
        %v561 = vadd.f32 %v334, %v513
        %v562 = vadd.f32 %v334, %v514
        %v563 = vadd.f32 %v334, %v515
        %v564 = vadd.f32 %v334, %v516
        %v565 = vadd.f32 %v334, %v517
        %566 = vset.pattern.permute.xlu0 1
        %567 = vperm.xlu0 %566, %v308
        %v568 = vpop.permute.xlu0 %567
        %570 = vset.pattern.permute.xlu0 1
        %571 = vperm.xlu0 %570, %v309
        %v572 = vpop.permute.xlu0 %571
        %574 = vset.pattern.permute.xlu0 1
        %575 = vperm.xlu0 %574, %v310
        %v576 = vpop.permute.xlu0 %575
        %578 = vset.pattern.permute.xlu0 1
        %579 = vperm.xlu0 %578, %v311
        %v580 = vpop.permute.xlu0 %579
        %v582 = vlaneseq
        %v583 = vshrl.u32 %v582, 7
        %v584 = vsub.s32 1, %v583
        %v585 = vrot.slane %v298, %v584
        %v586 = vlaneseq
        %v587 = vshrl.u32 %v586, 7
        %v588 = vsub.s32 5, %v587
        %v589 = vrot.slane %v298, %v588
        %v590 = vlaneseq
        %v591 = vshrl.u32 %v590, 7
        %v592 = vsub.s32 1, %v591
        %v593 = vrot.slane %v299, %v592
        %v594 = vlaneseq
        %v595 = vshrl.u32 %v594, 7
        %v596 = vsub.s32 5, %v595
        %v597 = vrot.slane %v299, %v596
        %v598 = vlaneseq
        %v599 = vshrl.u32 %v598, 7
        %v600 = vsub.s32 1, %v599
        %v601 = vrot.slane %v300, %v600
        %v602 = vlaneseq
        %v603 = vshrl.u32 %v602, 7
        %v604 = vsub.s32 5, %v603
        %v605 = vrot.slane %v300, %v604
        %v606 = vlaneseq
        %v607 = vshrl.u32 %v606, 7
        %v608 = vsub.s32 1, %v607
        %v609 = vrot.slane %v301, %v608
        %v610 = vlaneseq
        %v611 = vshrl.u32 %v610, 7
        %v612 = vsub.s32 5, %v611
        %v613 = vrot.slane %v301, %v612
        %v614 = vlaneseq
        %v615 = vshrl.u32 %v614, 7
        %v616 = vsub.s32 1, %v615
        %v617 = vrot.slane %v302, %v616
        %v618 = vlaneseq
        %v619 = vshrl.u32 %v618, 7
        %v620 = vsub.s32 5, %v619
        %v621 = vrot.slane %v302, %v620
        %v622 = vlaneseq
        %v623 = vshrl.u32 %v622, 7
        %v624 = vsub.s32 1, %v623
        %v625 = vrot.slane %v303, %v624
        %v626 = vlaneseq
        %v627 = vshrl.u32 %v626, 7
        %v628 = vsub.s32 5, %v627
        %v629 = vrot.slane %v303, %v628
        %v642 = vlaneseq
        %v643 = vshrl.u32 %v642, 7
        %v644 = vsub.s32 1, %v643
        %v645 = vrot.slane %v585, %v644
        %v646 = vlaneseq
        %v647 = vshrl.u32 %v646, 7
        %v648 = vsub.s32 1, %v647
        %v649 = vrot.slane %v589, %v648
        %v650 = vlaneseq
        %v651 = vshrl.u32 %v650, 7
        %v652 = vsub.s32 1, %v651
        %v653 = vrot.slane %v593, %v652
        %v654 = vlaneseq
        %v655 = vshrl.u32 %v654, 7
        %v656 = vsub.s32 1, %v655
        %v657 = vrot.slane %v597, %v656
        %v658 = vlaneseq
        %v659 = vshrl.u32 %v658, 7
        %v660 = vsub.s32 1, %v659
        %v661 = vrot.slane %v601, %v660
        %v662 = vlaneseq
        %v663 = vshrl.u32 %v662, 7
        %v664 = vsub.s32 1, %v663
        %v665 = vrot.slane %v605, %v664
        %v666 = vlaneseq
        %v667 = vshrl.u32 %v666, 7
        %v668 = vsub.s32 1, %v667
        %v669 = vrot.slane %v609, %v668
        %v670 = vlaneseq
        %v671 = vshrl.u32 %v670, 7
        %v672 = vsub.s32 1, %v671
        %v673 = vrot.slane %v613, %v672
        %v674 = vlaneseq
        %v675 = vshrl.u32 %v674, 7
        %v676 = vsub.s32 1, %v675
        %v677 = vrot.slane %v617, %v676
        %v678 = vlaneseq
        %v679 = vshrl.u32 %v678, 7
        %v680 = vsub.s32 1, %v679
        %v681 = vrot.slane %v621, %v680
        %v682 = vlaneseq
        %v683 = vshrl.u32 %v682, 7
        %v684 = vsub.s32 1, %v683
        %v685 = vrot.slane %v625, %v684
        %v686 = vlaneseq
        %v687 = vshrl.u32 %v686, 7
        %v688 = vsub.s32 1, %v687
        %v689 = vrot.slane %v629, %v688
        %v690 = vmul.f32 %v568, %v645
        %v691 = vmul.f32 %v568, %v649
        %v692 = vmul.f32 %v568, %v653
        %v693 = vmul.f32 %v568, %v657
        %v694 = vmul.f32 %v568, %v661
        %v695 = vmul.f32 %v568, %v665
        %v696 = vmul.f32 %v568, %v669
        %v697 = vmul.f32 %v568, %v673
        %v698 = vmul.f32 %v568, %v677
        %v699 = vmul.f32 %v568, %v681
        %v700 = vmul.f32 %v568, %v685
        %v701 = vmul.f32 %v568, %v689
        %v702 = vmul.f32 %v572, %v645
        %v703 = vmul.f32 %v572, %v649
        %v704 = vmul.f32 %v572, %v653
        %v705 = vmul.f32 %v572, %v657
        %v706 = vmul.f32 %v572, %v661
        %v707 = vmul.f32 %v572, %v665
        %v708 = vmul.f32 %v572, %v669
        %v709 = vmul.f32 %v572, %v673
        %v710 = vmul.f32 %v572, %v677
        %v711 = vmul.f32 %v572, %v681
        %v712 = vmul.f32 %v572, %v685
        %v713 = vmul.f32 %v572, %v689
        %v714 = vmul.f32 %v576, %v645
        %v715 = vmul.f32 %v576, %v649
        %v716 = vmul.f32 %v576, %v653
        %v717 = vmul.f32 %v576, %v657
        %v718 = vmul.f32 %v576, %v661
        %v719 = vmul.f32 %v576, %v665
        %v720 = vmul.f32 %v576, %v669
        %v721 = vmul.f32 %v576, %v673
        %v722 = vmul.f32 %v576, %v677
        %v723 = vmul.f32 %v576, %v681
        %v724 = vmul.f32 %v576, %v685
        %v725 = vmul.f32 %v576, %v689
        %v726 = vmul.f32 %v580, %v645
        %v727 = vmul.f32 %v580, %v649
        %v728 = vmul.f32 %v580, %v653
        %v729 = vmul.f32 %v580, %v657
        %v730 = vmul.f32 %v580, %v661
        %v731 = vmul.f32 %v580, %v665
        %v732 = vmul.f32 %v580, %v669
        %v733 = vmul.f32 %v580, %v673
        %v734 = vmul.f32 %v580, %v677
        %v735 = vmul.f32 %v580, %v681
        %v736 = vmul.f32 %v580, %v685
        %v737 = vmul.f32 %v580, %v689
        %v738 = vadd.f32 %v518, %v690
        %v739 = vadd.f32 %v519, %v691
        %v740 = vadd.f32 %v520, %v692
        %v741 = vadd.f32 %v521, %v693
        %v742 = vadd.f32 %v522, %v694
        %v743 = vadd.f32 %v523, %v695
        %v744 = vadd.f32 %v524, %v696
        %v745 = vadd.f32 %v525, %v697
        %v746 = vadd.f32 %v526, %v698
        %v747 = vadd.f32 %v527, %v699
        %v748 = vadd.f32 %v528, %v700
        %v749 = vadd.f32 %v529, %v701
        %v750 = vadd.f32 %v530, %v702
        %v751 = vadd.f32 %v531, %v703
        %v752 = vadd.f32 %v532, %v704
        %v753 = vadd.f32 %v533, %v705
        %v754 = vadd.f32 %v534, %v706
        %v755 = vadd.f32 %v535, %v707
        %v756 = vadd.f32 %v536, %v708
        %v757 = vadd.f32 %v537, %v709
        %v758 = vadd.f32 %v538, %v710
        %v759 = vadd.f32 %v539, %v711
        %v760 = vadd.f32 %v540, %v712
        %v761 = vadd.f32 %v541, %v713
        %v762 = vadd.f32 %v542, %v714
        %v763 = vadd.f32 %v543, %v715
        %v764 = vadd.f32 %v544, %v716
        %v765 = vadd.f32 %v545, %v717
        %v766 = vadd.f32 %v546, %v718
        %v767 = vadd.f32 %v547, %v719
        %v768 = vadd.f32 %v548, %v720
        %v769 = vadd.f32 %v549, %v721
        %v770 = vadd.f32 %v550, %v722
        %v771 = vadd.f32 %v551, %v723
        %v772 = vadd.f32 %v552, %v724
        %v773 = vadd.f32 %v553, %v725
        %v774 = vadd.f32 %v554, %v726
        %v775 = vadd.f32 %v555, %v727
        %v776 = vadd.f32 %v556, %v728
        %v777 = vadd.f32 %v557, %v729
        %v778 = vadd.f32 %v558, %v730
        %v779 = vadd.f32 %v559, %v731
        %v780 = vadd.f32 %v560, %v732
        %v781 = vadd.f32 %v561, %v733
        %v782 = vadd.f32 %v562, %v734
        %v783 = vadd.f32 %v563, %v735
        %v784 = vadd.f32 %v564, %v736
        %v785 = vadd.f32 %v565, %v737
        %786 = vset.pattern.permute.xlu0 2
        %787 = vperm.xlu0 %786, %v308
        %v788 = vpop.permute.xlu0 %787
        %790 = vset.pattern.permute.xlu0 2
        %791 = vperm.xlu0 %790, %v309
        %v792 = vpop.permute.xlu0 %791
        %794 = vset.pattern.permute.xlu0 2
        %795 = vperm.xlu0 %794, %v310
        %v796 = vpop.permute.xlu0 %795
        %798 = vset.pattern.permute.xlu0 2
        %799 = vperm.xlu0 %798, %v311
        %v800 = vpop.permute.xlu0 %799
        %v802 = vlaneseq
        %v803 = vshrl.u32 %v802, 7
        %v804 = vsub.s32 2, %v803
        %v805 = vrot.slane %v298, %v804
        %v806 = vlaneseq
        %v807 = vshrl.u32 %v806, 7
        %v808 = vsub.s32 6, %v807
        %v809 = vrot.slane %v298, %v808
        %v810 = vlaneseq
        %v811 = vshrl.u32 %v810, 7
        %v812 = vsub.s32 2, %v811
        %v813 = vrot.slane %v299, %v812
        %v814 = vlaneseq
        %v815 = vshrl.u32 %v814, 7
        %v816 = vsub.s32 6, %v815
        %v817 = vrot.slane %v299, %v816
        %v818 = vlaneseq
        %v819 = vshrl.u32 %v818, 7
        %v820 = vsub.s32 2, %v819
        %v821 = vrot.slane %v300, %v820
        %v822 = vlaneseq
        %v823 = vshrl.u32 %v822, 7
        %v824 = vsub.s32 6, %v823
        %v825 = vrot.slane %v300, %v824
        %v826 = vlaneseq
        %v827 = vshrl.u32 %v826, 7
        %v828 = vsub.s32 2, %v827
        %v829 = vrot.slane %v301, %v828
        %v830 = vlaneseq
        %v831 = vshrl.u32 %v830, 7
        %v832 = vsub.s32 6, %v831
        %v833 = vrot.slane %v301, %v832
        %v834 = vlaneseq
        %v835 = vshrl.u32 %v834, 7
        %v836 = vsub.s32 2, %v835
        %v837 = vrot.slane %v302, %v836
        %v838 = vlaneseq
        %v839 = vshrl.u32 %v838, 7
        %v840 = vsub.s32 6, %v839
        %v841 = vrot.slane %v302, %v840
        %v842 = vlaneseq
        %v843 = vshrl.u32 %v842, 7
        %v844 = vsub.s32 2, %v843
        %v845 = vrot.slane %v303, %v844
        %v846 = vlaneseq
        %v847 = vshrl.u32 %v846, 7
        %v848 = vsub.s32 6, %v847
        %v849 = vrot.slane %v303, %v848
        %v862 = vlaneseq
        %v863 = vshrl.u32 %v862, 7
        %v864 = vsub.s32 2, %v863
        %v865 = vrot.slane %v805, %v864
        %v866 = vlaneseq
        %v867 = vshrl.u32 %v866, 7
        %v868 = vsub.s32 2, %v867
        %v869 = vrot.slane %v809, %v868
        %v870 = vlaneseq
        %v871 = vshrl.u32 %v870, 7
        %v872 = vsub.s32 2, %v871
        %v873 = vrot.slane %v813, %v872
        %v874 = vlaneseq
        %v875 = vshrl.u32 %v874, 7
        %v876 = vsub.s32 2, %v875
        %v877 = vrot.slane %v817, %v876
        %v878 = vlaneseq
        %v879 = vshrl.u32 %v878, 7
        %v880 = vsub.s32 2, %v879
        %v881 = vrot.slane %v821, %v880
        %v882 = vlaneseq
        %v883 = vshrl.u32 %v882, 7
        %v884 = vsub.s32 2, %v883
        %v885 = vrot.slane %v825, %v884
        %v886 = vlaneseq
        %v887 = vshrl.u32 %v886, 7
        %v888 = vsub.s32 2, %v887
        %v889 = vrot.slane %v829, %v888
        %v890 = vlaneseq
        %v891 = vshrl.u32 %v890, 7
        %v892 = vsub.s32 2, %v891
        %v893 = vrot.slane %v833, %v892
        %v894 = vlaneseq
        %v895 = vshrl.u32 %v894, 7
        %v896 = vsub.s32 2, %v895
        %v897 = vrot.slane %v837, %v896
        %v898 = vlaneseq
        %v899 = vshrl.u32 %v898, 7
        %v900 = vsub.s32 2, %v899
        %v901 = vrot.slane %v841, %v900
        %v902 = vlaneseq
        %v903 = vshrl.u32 %v902, 7
        %v904 = vsub.s32 2, %v903
        %v905 = vrot.slane %v845, %v904
        %v906 = vlaneseq
        %v907 = vshrl.u32 %v906, 7
        %v908 = vsub.s32 2, %v907
        %v909 = vrot.slane %v849, %v908
        %v910 = vmul.f32 %v788, %v865
        %v911 = vmul.f32 %v788, %v869
        %v912 = vmul.f32 %v788, %v873
        %v913 = vmul.f32 %v788, %v877
        %v914 = vmul.f32 %v788, %v881
        %v915 = vmul.f32 %v788, %v885
        %v916 = vmul.f32 %v788, %v889
        %v917 = vmul.f32 %v788, %v893
        %v918 = vmul.f32 %v788, %v897
        %v919 = vmul.f32 %v788, %v901
        %v920 = vmul.f32 %v788, %v905
        %v921 = vmul.f32 %v788, %v909
        %v922 = vmul.f32 %v792, %v865
        %v923 = vmul.f32 %v792, %v869
        %v924 = vmul.f32 %v792, %v873
        %v925 = vmul.f32 %v792, %v877
        %v926 = vmul.f32 %v792, %v881
        %v927 = vmul.f32 %v792, %v885
        %v928 = vmul.f32 %v792, %v889
        %v929 = vmul.f32 %v792, %v893
        %v930 = vmul.f32 %v792, %v897
        %v931 = vmul.f32 %v792, %v901
        %v932 = vmul.f32 %v792, %v905
        %v933 = vmul.f32 %v792, %v909
        %v934 = vmul.f32 %v796, %v865
        %v935 = vmul.f32 %v796, %v869
        %v936 = vmul.f32 %v796, %v873
        %v937 = vmul.f32 %v796, %v877
        %v938 = vmul.f32 %v796, %v881
        %v939 = vmul.f32 %v796, %v885
        %v940 = vmul.f32 %v796, %v889
        %v941 = vmul.f32 %v796, %v893
        %v942 = vmul.f32 %v796, %v897
        %v943 = vmul.f32 %v796, %v901
        %v944 = vmul.f32 %v796, %v905
        %v945 = vmul.f32 %v796, %v909
        %v946 = vmul.f32 %v800, %v865
        %v947 = vmul.f32 %v800, %v869
        %v948 = vmul.f32 %v800, %v873
        %v949 = vmul.f32 %v800, %v877
        %v950 = vmul.f32 %v800, %v881
        %v951 = vmul.f32 %v800, %v885
        %v952 = vmul.f32 %v800, %v889
        %v953 = vmul.f32 %v800, %v893
        %v954 = vmul.f32 %v800, %v897
        %v955 = vmul.f32 %v800, %v901
        %v956 = vmul.f32 %v800, %v905
        %v957 = vmul.f32 %v800, %v909
        %v958 = vadd.f32 %v738, %v910
        %v959 = vadd.f32 %v739, %v911
        %v960 = vadd.f32 %v740, %v912
        %v961 = vadd.f32 %v741, %v913
        %v962 = vadd.f32 %v742, %v914
        %v963 = vadd.f32 %v743, %v915
        %v964 = vadd.f32 %v744, %v916
        %v965 = vadd.f32 %v745, %v917
        %v966 = vadd.f32 %v746, %v918
        %v967 = vadd.f32 %v747, %v919
        %v968 = vadd.f32 %v748, %v920
        %v969 = vadd.f32 %v749, %v921
        %v970 = vadd.f32 %v750, %v922
        %v971 = vadd.f32 %v751, %v923
        %v972 = vadd.f32 %v752, %v924
        %v973 = vadd.f32 %v753, %v925
        %v974 = vadd.f32 %v754, %v926
        %v975 = vadd.f32 %v755, %v927
        %v976 = vadd.f32 %v756, %v928
        %v977 = vadd.f32 %v757, %v929
        %v978 = vadd.f32 %v758, %v930
        %v979 = vadd.f32 %v759, %v931
        %v980 = vadd.f32 %v760, %v932
        %v981 = vadd.f32 %v761, %v933
        %v982 = vadd.f32 %v762, %v934
        %v983 = vadd.f32 %v763, %v935
        %v984 = vadd.f32 %v764, %v936
        %v985 = vadd.f32 %v765, %v937
        %v986 = vadd.f32 %v766, %v938
        %v987 = vadd.f32 %v767, %v939
        %v988 = vadd.f32 %v768, %v940
        %v989 = vadd.f32 %v769, %v941
        %v990 = vadd.f32 %v770, %v942
        %v991 = vadd.f32 %v771, %v943
        %v992 = vadd.f32 %v772, %v944
        %v993 = vadd.f32 %v773, %v945
        %v994 = vadd.f32 %v774, %v946
        %v995 = vadd.f32 %v775, %v947
        %v996 = vadd.f32 %v776, %v948
        %v997 = vadd.f32 %v777, %v949
        %v998 = vadd.f32 %v778, %v950
        %v999 = vadd.f32 %v779, %v951
        %v1000 = vadd.f32 %v780, %v952
        %v1001 = vadd.f32 %v781, %v953
        %v1002 = vadd.f32 %v782, %v954
        %v1003 = vadd.f32 %v783, %v955
        %v1004 = vadd.f32 %v784, %v956
        %v1005 = vadd.f32 %v785, %v957
        %v1006 = vmax.f32 %v958, 0.0
        %v1007 = vmax.f32 %v959, 0.0
        %v1008 = vmax.f32 %v960, 0.0
        %v1009 = vmax.f32 %v961, 0.0
        %v1010 = vmax.f32 %v962, 0.0
        %v1011 = vmax.f32 %v963, 0.0
        %v1012 = vmax.f32 %v964, 0.0
        %v1013 = vmax.f32 %v965, 0.0
        %v1014 = vmax.f32 %v966, 0.0
        %v1015 = vmax.f32 %v967, 0.0
        %v1016 = vmax.f32 %v968, 0.0
        %v1017 = vmax.f32 %v969, 0.0
        %v1018 = vmax.f32 %v970, 0.0
        %v1019 = vmax.f32 %v971, 0.0
        %v1020 = vmax.f32 %v972, 0.0
        %v1021 = vmax.f32 %v973, 0.0
        %v1022 = vmax.f32 %v974, 0.0
        %v1023 = vmax.f32 %v975, 0.0
        %v1024 = vmax.f32 %v976, 0.0
        %v1025 = vmax.f32 %v977, 0.0
        %v1026 = vmax.f32 %v978, 0.0
        %v1027 = vmax.f32 %v979, 0.0
        %v1028 = vmax.f32 %v980, 0.0
        %v1029 = vmax.f32 %v981, 0.0
        %v1030 = vmax.f32 %v982, 0.0
        %v1031 = vmax.f32 %v983, 0.0
        %v1032 = vmax.f32 %v984, 0.0
        %v1033 = vmax.f32 %v985, 0.0
        %v1034 = vmax.f32 %v986, 0.0
        %v1035 = vmax.f32 %v987, 0.0
        %v1036 = vmax.f32 %v988, 0.0
        %v1037 = vmax.f32 %v989, 0.0
        %v1038 = vmax.f32 %v990, 0.0
        %v1039 = vmax.f32 %v991, 0.0
        %v1040 = vmax.f32 %v992, 0.0
        %v1041 = vmax.f32 %v993, 0.0
        %v1042 = vmax.f32 %v994, 0.0
        %v1043 = vmax.f32 %v995, 0.0
        %v1044 = vmax.f32 %v996, 0.0
        %v1045 = vmax.f32 %v997, 0.0
        %v1046 = vmax.f32 %v998, 0.0
        %v1047 = vmax.f32 %v999, 0.0
        %v1048 = vmax.f32 %v1000, 0.0
        %v1049 = vmax.f32 %v1001, 0.0
        %v1050 = vmax.f32 %v1002, 0.0
        %v1051 = vmax.f32 %v1003, 0.0
        %v1052 = vmax.f32 %v1004, 0.0
        %v1053 = vmax.f32 %v1005, 0.0
        %v1054 = vld [vmem:[%s3] sm:$0xf]
        %v1055 = vld [vmem:[%s3 + $0x4] sm:$0xf]
        %v1056 = vld [vmem:[%s3 + $0x8] sm:$0xf]
        %v1057 = vld [vmem:[%s3 + $0xc] sm:$0xf]
        %v1058 = vld [vmem:[%s4] sm:$0xff]
        %v1059 = vld [vmem:[%s4 + $0x8] sm:$0xff]
        %v1060 = vld [vmem:[%s4 + $0x10] sm:$0xff]
        %v1061 = vld [vmem:[%s4 + $0x18] sm:$0xff]
        %v1062 = vpack.c.bf16 %v1018, %v1006
        %v1063 = vpack.c.bf16 %v1019, %v1007
        %v1064 = vpack.c.bf16 %v1020, %v1008
        %v1065 = vpack.c.bf16 %v1021, %v1009
        %v1066 = vpack.c.bf16 %v1022, %v1010
        %v1067 = vpack.c.bf16 %v1023, %v1011
        %v1068 = vpack.c.bf16 %v1024, %v1012
        %v1069 = vpack.c.bf16 %v1025, %v1013
        %v1070 = vpack.c.bf16 %v1026, %v1014
        %v1071 = vpack.c.bf16 %v1027, %v1015
        %v1072 = vpack.c.bf16 %v1028, %v1016
        %v1073 = vpack.c.bf16 %v1029, %v1017
        %v1074 = vpack.c.bf16 %v1042, %v1030
        %v1075 = vpack.c.bf16 %v1043, %v1031
        %v1076 = vpack.c.bf16 %v1044, %v1032
        %v1077 = vpack.c.bf16 %v1045, %v1033
        %v1078 = vpack.c.bf16 %v1046, %v1034
        %v1079 = vpack.c.bf16 %v1047, %v1035
        %v1080 = vpack.c.bf16 %v1048, %v1036
        %v1081 = vpack.c.bf16 %v1049, %v1037
        %v1082 = vpack.c.bf16 %v1050, %v1038
        %v1083 = vpack.c.bf16 %v1051, %v1039
        %v1084 = vpack.c.bf16 %v1052, %v1040
        %v1085 = vpack.c.bf16 %v1053, %v1041
        %1087 = vset.pattern.permute.xlu0 0
        %1088 = vperm.xlu0 %1087, %v1058
        %v1089 = vpop.permute.xlu0 %1088
        %1092 = vset.pattern.permute.xlu0 0
        %1093 = vperm.xlu0 %1092, %v1059
        %v1094 = vpop.permute.xlu0 %1093
        %1097 = vset.pattern.permute.xlu0 0
        %1098 = vperm.xlu0 %1097, %v1060
        %v1099 = vpop.permute.xlu0 %1098
        %1102 = vset.pattern.permute.xlu0 0
        %1103 = vperm.xlu0 %1102, %v1061
        %v1104 = vpop.permute.xlu0 %1103
        %v1110 = vunpack.c.l.b16 %v1054
        %v1111 = vunpack.c.l.b16 %v1055
        %v1112 = vunpack.c.l.b16 %v1056
        %v1113 = vunpack.c.l.b16 %v1057
        %v1114 = vpack.c.b16 %v1111, %v1110
        %v1115 = vpack.c.b16 %v1113, %v1112
        %vm1116 = vcmask 261120
        %v1118 = vsel %vm1116, %v1114, 0
        %v1121 = vsel %vm1116, %v1115, 0
        %1123 = vmatprep.subr.bf16.mxu0 %v1063
        %1124 = vmatpush1.bf16.msra.mxu0 %v1062
        %1125 = vmatprep.subr.bf16.mxu0 %v1075
        %1126 = vmatpush1.bf16.msra.mxu0 %v1074
        %1127 = vmatprep.subr.bf16.mxu0 0
        %1128 = vmatpush1.bf16.msra.mxu0 0
        %1129 = vmatprep.subr.bf16.mxu0 0
        %1130 = vmatpush1.bf16.msra.mxu0 0
        %1131 = vmatprep.subr.bf16.mxu0 0
        %1132 = vmatpush1.bf16.msra.mxu0 0
        %1133 = vmatprep.subr.bf16.mxu0 0
        %1134 = vmatpush1.bf16.msra.mxu0 0
        %1135 = vmatprep.subr.bf16.mxu0 0
        %1136 = vmatpush1.bf16.msra.mxu0 0
        %1137 = vmatprep.subr.bf16.mxu0 0
        %1138 = vmatpush1.bf16.msra.mxu0 0
        %1139 = vmatprep.subr.bf16.mxu0 0
        %1140 = vmatpush1.bf16.msra.mxu0 0
        %1141 = vmatprep.subr.bf16.mxu0 0
        %1142 = vmatpush1.bf16.msra.mxu0 0
        %1143 = vmatprep.subr.bf16.mxu0 0
        %1144 = vmatpush1.bf16.msra.mxu0 0
        %1145 = vmatprep.subr.bf16.mxu0 0
        %1146 = vmatpush1.bf16.msra.mxu0 0
        %1147 = vmatprep.subr.bf16.mxu0 0
        %1148 = vmatpush1.bf16.msra.mxu0 0
        %1149 = vmatprep.subr.bf16.mxu0 0
        %1150 = vmatpush1.bf16.msra.mxu0 0
        %1151 = vmatprep.subr.bf16.mxu0 0
        %1152 = vmatpush1.bf16.msra.mxu0 0
        %1153 = vmatprep.subr.bf16.mxu0 0
        %1154 = vmatpush1.bf16.msra.mxu0 0
        %1155 = vmatprep.mubr.bf16.mxu0 0
        %1156 = vmatmul.mubr.bf16.gmra.mrb[0].mxu0 %v1118
        %v1157 = vpop.f32.mrb[0].mxu0
        %v1158 = vadd.f32 %v1089, %v1157
        %v1159 = vpop.f32.mrb[0].mxu0
        %v1160 = vadd.f32 %v1089, %v1159
        %v1161 = vpop.f32.mrb[0].mxu0
        %v1162 = vadd.f32 %v1094, %v1161
        %v1163 = vpop.f32.mrb[0].mxu0
        %v1164 = vadd.f32 %v1094, %v1163
        %1165 = vmatprep.mubr.bf16.mxu0 0
        %1166 = vmatmul.mubr.bf16.gmra.mrb[0].mxu0 %v1121
        %v1167 = vpop.f32.mrb[0].mxu0
        %v1168 = vadd.f32 %v1099, %v1167
        %v1169 = vpop.f32.mrb[0].mxu0
        %v1170 = vadd.f32 %v1099, %v1169
        %v1171 = vpop.f32.mrb[0].mxu0
        %v1172 = vadd.f32 %v1104, %v1171
        %v1173 = vpop.f32.mrb[0].mxu0
        %v1174 = vadd.f32 %v1104, %v1173
        %1175 = vdwg.mxu0
        %1176 = vmatprep.subr.bf16.mxu0 %v1065
        %1177 = vmatpush1.bf16.msra.mxu0 %v1064
        %1178 = vmatprep.subr.bf16.mxu0 %v1077
        %1179 = vmatpush1.bf16.msra.mxu0 %v1076
        %1180 = vmatprep.subr.bf16.mxu0 0
        %1181 = vmatpush1.bf16.msra.mxu0 0
        %1182 = vmatprep.subr.bf16.mxu0 0
        %1183 = vmatpush1.bf16.msra.mxu0 0
        %1184 = vmatprep.subr.bf16.mxu0 0
        %1185 = vmatpush1.bf16.msra.mxu0 0
        %1186 = vmatprep.subr.bf16.mxu0 0
        %1187 = vmatpush1.bf16.msra.mxu0 0
        %1188 = vmatprep.subr.bf16.mxu0 0
        %1189 = vmatpush1.bf16.msra.mxu0 0
        %1190 = vmatprep.subr.bf16.mxu0 0
        %1191 = vmatpush1.bf16.msra.mxu0 0
        %1192 = vmatprep.subr.bf16.mxu0 0
        %1193 = vmatpush1.bf16.msra.mxu0 0
        %1194 = vmatprep.subr.bf16.mxu0 0
        %1195 = vmatpush1.bf16.msra.mxu0 0
        %1196 = vmatprep.subr.bf16.mxu0 0
        %1197 = vmatpush1.bf16.msra.mxu0 0
        %1198 = vmatprep.subr.bf16.mxu0 0
        %1199 = vmatpush1.bf16.msra.mxu0 0
        %1200 = vmatprep.subr.bf16.mxu0 0
        %1201 = vmatpush1.bf16.msra.mxu0 0
        %1202 = vmatprep.subr.bf16.mxu0 0
        %1203 = vmatpush1.bf16.msra.mxu0 0
        %1204 = vmatprep.subr.bf16.mxu0 0
        %1205 = vmatpush1.bf16.msra.mxu0 0
        %1206 = vmatprep.subr.bf16.mxu0 0
        %1207 = vmatpush1.bf16.msra.mxu0 0
        %1208 = vmatprep.mubr.bf16.mxu0 0
        %1209 = vmatmul.mubr.bf16.gmra.mrb[0].mxu0 %v1118
        %v1210 = vpop.f32.mrb[0].mxu0
        %v1211 = vadd.f32 %v1089, %v1210
        %v1212 = vpop.f32.mrb[0].mxu0
        %v1213 = vadd.f32 %v1089, %v1212
        %v1214 = vpop.f32.mrb[0].mxu0
        %v1215 = vadd.f32 %v1094, %v1214
        %v1216 = vpop.f32.mrb[0].mxu0
        %v1217 = vadd.f32 %v1094, %v1216
        %1218 = vmatprep.mubr.bf16.mxu0 0
        %1219 = vmatmul.mubr.bf16.gmra.mrb[0].mxu0 %v1121
        %v1220 = vpop.f32.mrb[0].mxu0
        %v1221 = vadd.f32 %v1099, %v1220
        %v1222 = vpop.f32.mrb[0].mxu0
        %v1223 = vadd.f32 %v1099, %v1222
        %v1224 = vpop.f32.mrb[0].mxu0
        %v1225 = vadd.f32 %v1104, %v1224
        %v1226 = vpop.f32.mrb[0].mxu0
        %v1227 = vadd.f32 %v1104, %v1226
        %1228 = vdwg.mxu0
        %1229 = vmatprep.subr.bf16.mxu0 %v1067
        %1230 = vmatpush1.bf16.msra.mxu0 %v1066
        %1231 = vmatprep.subr.bf16.mxu0 %v1079
        %1232 = vmatpush1.bf16.msra.mxu0 %v1078
        %1233 = vmatprep.subr.bf16.mxu0 0
        %1234 = vmatpush1.bf16.msra.mxu0 0
        %1235 = vmatprep.subr.bf16.mxu0 0
        %1236 = vmatpush1.bf16.msra.mxu0 0
        %1237 = vmatprep.subr.bf16.mxu0 0
        %1238 = vmatpush1.bf16.msra.mxu0 0
        %1239 = vmatprep.subr.bf16.mxu0 0
        %1240 = vmatpush1.bf16.msra.mxu0 0
        %1241 = vmatprep.subr.bf16.mxu0 0
        %1242 = vmatpush1.bf16.msra.mxu0 0
        %1243 = vmatprep.subr.bf16.mxu0 0
        %1244 = vmatpush1.bf16.msra.mxu0 0
        %1245 = vmatprep.subr.bf16.mxu0 0
        %1246 = vmatpush1.bf16.msra.mxu0 0
        %1247 = vmatprep.subr.bf16.mxu0 0
        %1248 = vmatpush1.bf16.msra.mxu0 0
        %1249 = vmatprep.subr.bf16.mxu0 0
        %1250 = vmatpush1.bf16.msra.mxu0 0
        %1251 = vmatprep.subr.bf16.mxu0 0
        %1252 = vmatpush1.bf16.msra.mxu0 0
        %1253 = vmatprep.subr.bf16.mxu0 0
        %1254 = vmatpush1.bf16.msra.mxu0 0
        %1255 = vmatprep.subr.bf16.mxu0 0
        %1256 = vmatpush1.bf16.msra.mxu0 0
        %1257 = vmatprep.subr.bf16.mxu0 0
        %1258 = vmatpush1.bf16.msra.mxu0 0
        %1259 = vmatprep.subr.bf16.mxu0 0
        %1260 = vmatpush1.bf16.msra.mxu0 0
        %1261 = vmatprep.mubr.bf16.mxu0 0
        %1262 = vmatmul.mubr.bf16.gmra.mrb[0].mxu0 %v1118
        %v1263 = vpop.f32.mrb[0].mxu0
        %v1264 = vadd.f32 %v1089, %v1263
        %v1265 = vpop.f32.mrb[0].mxu0
        %v1266 = vadd.f32 %v1089, %v1265
        %v1267 = vpop.f32.mrb[0].mxu0
        %v1268 = vadd.f32 %v1094, %v1267
        %v1269 = vpop.f32.mrb[0].mxu0
        %v1270 = vadd.f32 %v1094, %v1269
        %1271 = vmatprep.mubr.bf16.mxu0 0
        %1272 = vmatmul.mubr.bf16.gmra.mrb[0].mxu0 %v1121
        %v1273 = vpop.f32.mrb[0].mxu0
        %v1274 = vadd.f32 %v1099, %v1273
        %v1275 = vpop.f32.mrb[0].mxu0
        %v1276 = vadd.f32 %v1099, %v1275
        %v1277 = vpop.f32.mrb[0].mxu0
        %v1278 = vadd.f32 %v1104, %v1277
        %v1279 = vpop.f32.mrb[0].mxu0
        %v1280 = vadd.f32 %v1104, %v1279
        %1281 = vdwg.mxu0
        %1282 = vmatprep.subr.bf16.mxu0 %v1069
        %1283 = vmatpush1.bf16.msra.mxu0 %v1068
        %1284 = vmatprep.subr.bf16.mxu0 %v1081
        %1285 = vmatpush1.bf16.msra.mxu0 %v1080
        %1286 = vmatprep.subr.bf16.mxu0 0
        %1287 = vmatpush1.bf16.msra.mxu0 0
        %1288 = vmatprep.subr.bf16.mxu0 0
        %1289 = vmatpush1.bf16.msra.mxu0 0
        %1290 = vmatprep.subr.bf16.mxu0 0
        %1291 = vmatpush1.bf16.msra.mxu0 0
        %1292 = vmatprep.subr.bf16.mxu0 0
        %1293 = vmatpush1.bf16.msra.mxu0 0
        %1294 = vmatprep.subr.bf16.mxu0 0
        %1295 = vmatpush1.bf16.msra.mxu0 0
        %1296 = vmatprep.subr.bf16.mxu0 0
        %1297 = vmatpush1.bf16.msra.mxu0 0
        %1298 = vmatprep.subr.bf16.mxu0 0
        %1299 = vmatpush1.bf16.msra.mxu0 0
        %1300 = vmatprep.subr.bf16.mxu0 0
        %1301 = vmatpush1.bf16.msra.mxu0 0
        %1302 = vmatprep.subr.bf16.mxu0 0
        %1303 = vmatpush1.bf16.msra.mxu0 0
        %1304 = vmatprep.subr.bf16.mxu0 0
        %1305 = vmatpush1.bf16.msra.mxu0 0
        %1306 = vmatprep.subr.bf16.mxu0 0
        %1307 = vmatpush1.bf16.msra.mxu0 0
        %1308 = vmatprep.subr.bf16.mxu0 0
        %1309 = vmatpush1.bf16.msra.mxu0 0
        %1310 = vmatprep.subr.bf16.mxu0 0
        %1311 = vmatpush1.bf16.msra.mxu0 0
        %1312 = vmatprep.subr.bf16.mxu0 0
        %1313 = vmatpush1.bf16.msra.mxu0 0
        %1314 = vmatprep.mubr.bf16.mxu0 0
        %1315 = vmatmul.mubr.bf16.gmra.mrb[0].mxu0 %v1118
        %v1316 = vpop.f32.mrb[0].mxu0
        %v1317 = vadd.f32 %v1089, %v1316
        %v1318 = vpop.f32.mrb[0].mxu0
        %v1319 = vadd.f32 %v1089, %v1318
        %v1320 = vpop.f32.mrb[0].mxu0
        %v1321 = vadd.f32 %v1094, %v1320
        %v1322 = vpop.f32.mrb[0].mxu0
        %v1323 = vadd.f32 %v1094, %v1322
        %1324 = vmatprep.mubr.bf16.mxu0 0
        %1325 = vmatmul.mubr.bf16.gmra.mrb[0].mxu0 %v1121
        %v1326 = vpop.f32.mrb[0].mxu0
        %v1327 = vadd.f32 %v1099, %v1326
        %v1328 = vpop.f32.mrb[0].mxu0
        %v1329 = vadd.f32 %v1099, %v1328
        %v1330 = vpop.f32.mrb[0].mxu0
        %v1331 = vadd.f32 %v1104, %v1330
        %v1332 = vpop.f32.mrb[0].mxu0
        %v1333 = vadd.f32 %v1104, %v1332
        %1334 = vdwg.mxu0
        %1335 = vmatprep.subr.bf16.mxu0 %v1071
        %1336 = vmatpush1.bf16.msra.mxu0 %v1070
        %1337 = vmatprep.subr.bf16.mxu0 %v1083
        %1338 = vmatpush1.bf16.msra.mxu0 %v1082
        %1339 = vmatprep.subr.bf16.mxu0 0
        %1340 = vmatpush1.bf16.msra.mxu0 0
        %1341 = vmatprep.subr.bf16.mxu0 0
        %1342 = vmatpush1.bf16.msra.mxu0 0
        %1343 = vmatprep.subr.bf16.mxu0 0
        %1344 = vmatpush1.bf16.msra.mxu0 0
        %1345 = vmatprep.subr.bf16.mxu0 0
        %1346 = vmatpush1.bf16.msra.mxu0 0
        %1347 = vmatprep.subr.bf16.mxu0 0
        %1348 = vmatpush1.bf16.msra.mxu0 0
        %1349 = vmatprep.subr.bf16.mxu0 0
        %1350 = vmatpush1.bf16.msra.mxu0 0
        %1351 = vmatprep.subr.bf16.mxu0 0
        %1352 = vmatpush1.bf16.msra.mxu0 0
        %1353 = vmatprep.subr.bf16.mxu0 0
        %1354 = vmatpush1.bf16.msra.mxu0 0
        %1355 = vmatprep.subr.bf16.mxu0 0
        %1356 = vmatpush1.bf16.msra.mxu0 0
        %1357 = vmatprep.subr.bf16.mxu0 0
        %1358 = vmatpush1.bf16.msra.mxu0 0
        %1359 = vmatprep.subr.bf16.mxu0 0
        %1360 = vmatpush1.bf16.msra.mxu0 0
        %1361 = vmatprep.subr.bf16.mxu0 0
        %1362 = vmatpush1.bf16.msra.mxu0 0
        %1363 = vmatprep.subr.bf16.mxu0 0
        %1364 = vmatpush1.bf16.msra.mxu0 0
        %1365 = vmatprep.subr.bf16.mxu0 0
        %1366 = vmatpush1.bf16.msra.mxu0 0
        %1367 = vmatprep.mubr.bf16.mxu0 0
        %1368 = vmatmul.mubr.bf16.gmra.mrb[0].mxu0 %v1118
        %v1369 = vpop.f32.mrb[0].mxu0
        %v1370 = vadd.f32 %v1089, %v1369
        %v1371 = vpop.f32.mrb[0].mxu0
        %v1372 = vadd.f32 %v1089, %v1371
        %v1373 = vpop.f32.mrb[0].mxu0
        %v1374 = vadd.f32 %v1094, %v1373
        %v1375 = vpop.f32.mrb[0].mxu0
        %v1376 = vadd.f32 %v1094, %v1375
        %1377 = vmatprep.mubr.bf16.mxu0 0
        %1378 = vmatmul.mubr.bf16.gmra.mrb[0].mxu0 %v1121
        %v1379 = vpop.f32.mrb[0].mxu0
        %v1380 = vadd.f32 %v1099, %v1379
        %v1381 = vpop.f32.mrb[0].mxu0
        %v1382 = vadd.f32 %v1099, %v1381
        %v1383 = vpop.f32.mrb[0].mxu0
        %v1384 = vadd.f32 %v1104, %v1383
        %v1385 = vpop.f32.mrb[0].mxu0
        %v1386 = vadd.f32 %v1104, %v1385
        %1387 = vdwg.mxu0
        %1388 = vmatprep.subr.bf16.mxu0 %v1073
        %1389 = vmatpush1.bf16.msra.mxu0 %v1072
        %1390 = vmatprep.subr.bf16.mxu0 %v1085
        %1391 = vmatpush1.bf16.msra.mxu0 %v1084
        %1392 = vmatprep.subr.bf16.mxu0 0
        %1393 = vmatpush1.bf16.msra.mxu0 0
        %1394 = vmatprep.subr.bf16.mxu0 0
        %1395 = vmatpush1.bf16.msra.mxu0 0
        %1396 = vmatprep.subr.bf16.mxu0 0
        %1397 = vmatpush1.bf16.msra.mxu0 0
        %1398 = vmatprep.subr.bf16.mxu0 0
        %1399 = vmatpush1.bf16.msra.mxu0 0
        %1400 = vmatprep.subr.bf16.mxu0 0
        %1401 = vmatpush1.bf16.msra.mxu0 0
        %1402 = vmatprep.subr.bf16.mxu0 0
        %1403 = vmatpush1.bf16.msra.mxu0 0
        %1404 = vmatprep.subr.bf16.mxu0 0
        %1405 = vmatpush1.bf16.msra.mxu0 0
        %1406 = vmatprep.subr.bf16.mxu0 0
        %1407 = vmatpush1.bf16.msra.mxu0 0
        %1408 = vmatprep.subr.bf16.mxu0 0
        %1409 = vmatpush1.bf16.msra.mxu0 0
        %1410 = vmatprep.subr.bf16.mxu0 0
        %1411 = vmatpush1.bf16.msra.mxu0 0
        %1412 = vmatprep.subr.bf16.mxu0 0
        %1413 = vmatpush1.bf16.msra.mxu0 0
        %1414 = vmatprep.subr.bf16.mxu0 0
        %1415 = vmatpush1.bf16.msra.mxu0 0
        %1416 = vmatprep.subr.bf16.mxu0 0
        %1417 = vmatpush1.bf16.msra.mxu0 0
        %1418 = vmatprep.subr.bf16.mxu0 0
        %1419 = vmatpush1.bf16.msra.mxu0 0
        %1420 = vmatprep.mubr.bf16.mxu0 0
        %1421 = vmatmul.mubr.bf16.gmra.mrb[0].mxu0 %v1118
        %v1422 = vpop.f32.mrb[0].mxu0
        %v1423 = vadd.f32 %v1089, %v1422
        %v1424 = vpop.f32.mrb[0].mxu0
        %v1425 = vadd.f32 %v1089, %v1424
        %v1426 = vpop.f32.mrb[0].mxu0
        %v1427 = vadd.f32 %v1094, %v1426
        %v1428 = vpop.f32.mrb[0].mxu0
        %v1429 = vadd.f32 %v1094, %v1428
        %1430 = vmatprep.mubr.bf16.mxu0 0
        %1431 = vmatmul.mubr.bf16.gmra.mrb[0].mxu0 %v1121
        %v1432 = vpop.f32.mrb[0].mxu0
        %v1433 = vadd.f32 %v1099, %v1432
        %v1434 = vpop.f32.mrb[0].mxu0
        %v1435 = vadd.f32 %v1099, %v1434
        %v1436 = vpop.f32.mrb[0].mxu0
        %v1437 = vadd.f32 %v1104, %v1436
        %v1438 = vpop.f32.mrb[0].mxu0
        %v1439 = vadd.f32 %v1104, %v1438
        %1440 = vdwg.mxu0
        %v1441 = vmax.f32 %v1158, 0.0
        %v1442 = vmax.f32 %v1160, 0.0
        %v1443 = vmax.f32 %v1211, 0.0
        %v1444 = vmax.f32 %v1213, 0.0
        %v1445 = vmax.f32 %v1264, 0.0
        %v1446 = vmax.f32 %v1266, 0.0
        %v1447 = vmax.f32 %v1317, 0.0
        %v1448 = vmax.f32 %v1319, 0.0
        %v1449 = vmax.f32 %v1370, 0.0
        %v1450 = vmax.f32 %v1372, 0.0
        %v1451 = vmax.f32 %v1423, 0.0
        %v1452 = vmax.f32 %v1425, 0.0
        %v1453 = vmax.f32 %v1162, 0.0
        %v1454 = vmax.f32 %v1164, 0.0
        %v1455 = vmax.f32 %v1215, 0.0
        %v1456 = vmax.f32 %v1217, 0.0
        %v1457 = vmax.f32 %v1268, 0.0
        %v1458 = vmax.f32 %v1270, 0.0
        %v1459 = vmax.f32 %v1321, 0.0
        %v1460 = vmax.f32 %v1323, 0.0
        %v1461 = vmax.f32 %v1374, 0.0
        %v1462 = vmax.f32 %v1376, 0.0
        %v1463 = vmax.f32 %v1427, 0.0
        %v1464 = vmax.f32 %v1429, 0.0
        %v1465 = vmax.f32 %v1168, 0.0
        %v1466 = vmax.f32 %v1170, 0.0
        %v1467 = vmax.f32 %v1221, 0.0
        %v1468 = vmax.f32 %v1223, 0.0
        %v1469 = vmax.f32 %v1274, 0.0
        %v1470 = vmax.f32 %v1276, 0.0
        %v1471 = vmax.f32 %v1327, 0.0
        %v1472 = vmax.f32 %v1329, 0.0
        %v1473 = vmax.f32 %v1380, 0.0
        %v1474 = vmax.f32 %v1382, 0.0
        %v1475 = vmax.f32 %v1433, 0.0
        %v1476 = vmax.f32 %v1435, 0.0
        %v1477 = vmax.f32 %v1172, 0.0
        %v1478 = vmax.f32 %v1174, 0.0
        %v1479 = vmax.f32 %v1225, 0.0
        %v1480 = vmax.f32 %v1227, 0.0
        %v1481 = vmax.f32 %v1278, 0.0
        %v1482 = vmax.f32 %v1280, 0.0
        %v1483 = vmax.f32 %v1331, 0.0
        %v1484 = vmax.f32 %v1333, 0.0
        %v1485 = vmax.f32 %v1384, 0.0
        %v1486 = vmax.f32 %v1386, 0.0
        %v1487 = vmax.f32 %v1437, 0.0
        %v1488 = vmax.f32 %v1439, 0.0
        %v1489 = vld [vmem:[%s5] sm:$0x3]
        %v1490 = vld [vmem:[%s6] sm:$0xf]
        %v1491 = vpack.c.bf16 %v1453, %v1441
        %v1492 = vpack.c.bf16 %v1454, %v1442
        %v1493 = vpack.c.bf16 %v1455, %v1443
        %v1494 = vpack.c.bf16 %v1456, %v1444
        %v1495 = vpack.c.bf16 %v1457, %v1445
        %v1496 = vpack.c.bf16 %v1458, %v1446
        %v1497 = vpack.c.bf16 %v1459, %v1447
        %v1498 = vpack.c.bf16 %v1460, %v1448
        %v1499 = vpack.c.bf16 %v1461, %v1449
        %v1500 = vpack.c.bf16 %v1462, %v1450
        %v1501 = vpack.c.bf16 %v1463, %v1451
        %v1502 = vpack.c.bf16 %v1464, %v1452
        %v1503 = vpack.c.bf16 %v1477, %v1465
        %v1504 = vpack.c.bf16 %v1478, %v1466
        %v1505 = vpack.c.bf16 %v1479, %v1467
        %v1506 = vpack.c.bf16 %v1480, %v1468
        %v1507 = vpack.c.bf16 %v1481, %v1469
        %v1508 = vpack.c.bf16 %v1482, %v1470
        %v1509 = vpack.c.bf16 %v1483, %v1471
        %v1510 = vpack.c.bf16 %v1484, %v1472
        %v1511 = vpack.c.bf16 %v1485, %v1473
        %v1512 = vpack.c.bf16 %v1486, %v1474
        %v1513 = vpack.c.bf16 %v1487, %v1475
        %v1514 = vpack.c.bf16 %v1488, %v1476
        %1516 = vset.pattern.permute.xlu0 0
        %1517 = vperm.xlu0 %1516, %v1490
        %v1518 = vpop.permute.xlu0 %1517
        %v1521 = vsel %vm1116, %v1489, 0
        %1523 = vmatprep.subr.bf16.mxu0 %v1492
        %1524 = vmatpush1.bf16.msra.mxu0 %v1491
        %1525 = vmatprep.subr.bf16.mxu0 %v1504
        %1526 = vmatpush1.bf16.msra.mxu0 %v1503
        %1527 = vmatprep.subr.bf16.mxu0 0
        %1528 = vmatpush1.bf16.msra.mxu0 0
        %1529 = vmatprep.subr.bf16.mxu0 0
        %1530 = vmatpush1.bf16.msra.mxu0 0
        %1531 = vmatprep.subr.bf16.mxu0 0
        %1532 = vmatpush1.bf16.msra.mxu0 0
        %1533 = vmatprep.subr.bf16.mxu0 0
        %1534 = vmatpush1.bf16.msra.mxu0 0
        %1535 = vmatprep.subr.bf16.mxu0 0
        %1536 = vmatpush1.bf16.msra.mxu0 0
        %1537 = vmatprep.subr.bf16.mxu0 0
        %1538 = vmatpush1.bf16.msra.mxu0 0
        %1539 = vmatprep.subr.bf16.mxu0 0
        %1540 = vmatpush1.bf16.msra.mxu0 0
        %1541 = vmatprep.subr.bf16.mxu0 0
        %1542 = vmatpush1.bf16.msra.mxu0 0
        %1543 = vmatprep.subr.bf16.mxu0 0
        %1544 = vmatpush1.bf16.msra.mxu0 0
        %1545 = vmatprep.subr.bf16.mxu0 0
        %1546 = vmatpush1.bf16.msra.mxu0 0
        %1547 = vmatprep.subr.bf16.mxu0 0
        %1548 = vmatpush1.bf16.msra.mxu0 0
        %1549 = vmatprep.subr.bf16.mxu0 0
        %1550 = vmatpush1.bf16.msra.mxu0 0
        %1551 = vmatprep.subr.bf16.mxu0 0
        %1552 = vmatpush1.bf16.msra.mxu0 0
        %1553 = vmatprep.subr.bf16.mxu0 0
        %1554 = vmatpush1.bf16.msra.mxu0 0
        %1555 = vmatprep.mubr.bf16.mxu0 0
        %1556 = vmatmul.mubr.bf16.gmra.mrb[0].mxu0 %v1521
        %v1557 = vpop.f32.mrb[0].mxu0
        %v1558 = vadd.f32 %v1518, %v1557
        %v1559 = vpop.f32.mrb[0].mxu0
        %v1560 = vadd.f32 %v1518, %v1559
        %v1561 = vpop.f32.mrb[0].mxu0
        %v1562 = vpop.f32.mrb[0].mxu0
        %1563 = vdwg.mxu0
        %1564 = vmatprep.subr.bf16.mxu0 %v1494
        %1565 = vmatpush1.bf16.msra.mxu0 %v1493
        %1566 = vmatprep.subr.bf16.mxu0 %v1506
        %1567 = vmatpush1.bf16.msra.mxu0 %v1505
        %1568 = vmatprep.subr.bf16.mxu0 0
        %1569 = vmatpush1.bf16.msra.mxu0 0
        %1570 = vmatprep.subr.bf16.mxu0 0
        %1571 = vmatpush1.bf16.msra.mxu0 0
        %1572 = vmatprep.subr.bf16.mxu0 0
        %1573 = vmatpush1.bf16.msra.mxu0 0
        %1574 = vmatprep.subr.bf16.mxu0 0
        %1575 = vmatpush1.bf16.msra.mxu0 0
        %1576 = vmatprep.subr.bf16.mxu0 0
        %1577 = vmatpush1.bf16.msra.mxu0 0
        %1578 = vmatprep.subr.bf16.mxu0 0
        %1579 = vmatpush1.bf16.msra.mxu0 0
        %1580 = vmatprep.subr.bf16.mxu0 0
        %1581 = vmatpush1.bf16.msra.mxu0 0
        %1582 = vmatprep.subr.bf16.mxu0 0
        %1583 = vmatpush1.bf16.msra.mxu0 0
        %1584 = vmatprep.subr.bf16.mxu0 0
        %1585 = vmatpush1.bf16.msra.mxu0 0
        %1586 = vmatprep.subr.bf16.mxu0 0
        %1587 = vmatpush1.bf16.msra.mxu0 0
        %1588 = vmatprep.subr.bf16.mxu0 0
        %1589 = vmatpush1.bf16.msra.mxu0 0
        %1590 = vmatprep.subr.bf16.mxu0 0
        %1591 = vmatpush1.bf16.msra.mxu0 0
        %1592 = vmatprep.subr.bf16.mxu0 0
        %1593 = vmatpush1.bf16.msra.mxu0 0
        %1594 = vmatprep.subr.bf16.mxu0 0
        %1595 = vmatpush1.bf16.msra.mxu0 0
        %1596 = vmatprep.mubr.bf16.mxu0 0
        %1597 = vmatmul.mubr.bf16.gmra.mrb[0].mxu0 %v1521
        %v1598 = vpop.f32.mrb[0].mxu0
        %v1599 = vadd.f32 %v1518, %v1598
        %v1600 = vpop.f32.mrb[0].mxu0
        %v1601 = vadd.f32 %v1518, %v1600
        %v1602 = vpop.f32.mrb[0].mxu0
        %v1603 = vpop.f32.mrb[0].mxu0
        %1604 = vdwg.mxu0
        %1605 = vmatprep.subr.bf16.mxu0 %v1496
        %1606 = vmatpush1.bf16.msra.mxu0 %v1495
        %1607 = vmatprep.subr.bf16.mxu0 %v1508
        %1608 = vmatpush1.bf16.msra.mxu0 %v1507
        %1609 = vmatprep.subr.bf16.mxu0 0
        %1610 = vmatpush1.bf16.msra.mxu0 0
        %1611 = vmatprep.subr.bf16.mxu0 0
        %1612 = vmatpush1.bf16.msra.mxu0 0
        %1613 = vmatprep.subr.bf16.mxu0 0
        %1614 = vmatpush1.bf16.msra.mxu0 0
        %1615 = vmatprep.subr.bf16.mxu0 0
        %1616 = vmatpush1.bf16.msra.mxu0 0
        %1617 = vmatprep.subr.bf16.mxu0 0
        %1618 = vmatpush1.bf16.msra.mxu0 0
        %1619 = vmatprep.subr.bf16.mxu0 0
        %1620 = vmatpush1.bf16.msra.mxu0 0
        %1621 = vmatprep.subr.bf16.mxu0 0
        %1622 = vmatpush1.bf16.msra.mxu0 0
        %1623 = vmatprep.subr.bf16.mxu0 0
        %1624 = vmatpush1.bf16.msra.mxu0 0
        %1625 = vmatprep.subr.bf16.mxu0 0
        %1626 = vmatpush1.bf16.msra.mxu0 0
        %1627 = vmatprep.subr.bf16.mxu0 0
        %1628 = vmatpush1.bf16.msra.mxu0 0
        %1629 = vmatprep.subr.bf16.mxu0 0
        %1630 = vmatpush1.bf16.msra.mxu0 0
        %1631 = vmatprep.subr.bf16.mxu0 0
        %1632 = vmatpush1.bf16.msra.mxu0 0
        %1633 = vmatprep.subr.bf16.mxu0 0
        %1634 = vmatpush1.bf16.msra.mxu0 0
        %1635 = vmatprep.subr.bf16.mxu0 0
        %1636 = vmatpush1.bf16.msra.mxu0 0
        %1637 = vmatprep.mubr.bf16.mxu0 0
        %1638 = vmatmul.mubr.bf16.gmra.mrb[0].mxu0 %v1521
        %v1639 = vpop.f32.mrb[0].mxu0
        %v1640 = vadd.f32 %v1518, %v1639
        %v1641 = vpop.f32.mrb[0].mxu0
        %v1642 = vadd.f32 %v1518, %v1641
        %v1643 = vpop.f32.mrb[0].mxu0
        %v1644 = vpop.f32.mrb[0].mxu0
        %1645 = vdwg.mxu0
        %1646 = vmatprep.subr.bf16.mxu0 %v1498
        %1647 = vmatpush1.bf16.msra.mxu0 %v1497
        %1648 = vmatprep.subr.bf16.mxu0 %v1510
        %1649 = vmatpush1.bf16.msra.mxu0 %v1509
        %1650 = vmatprep.subr.bf16.mxu0 0
        %1651 = vmatpush1.bf16.msra.mxu0 0
        %1652 = vmatprep.subr.bf16.mxu0 0
        %1653 = vmatpush1.bf16.msra.mxu0 0
        %1654 = vmatprep.subr.bf16.mxu0 0
        %1655 = vmatpush1.bf16.msra.mxu0 0
        %1656 = vmatprep.subr.bf16.mxu0 0
        %1657 = vmatpush1.bf16.msra.mxu0 0
        %1658 = vmatprep.subr.bf16.mxu0 0
        %1659 = vmatpush1.bf16.msra.mxu0 0
        %1660 = vmatprep.subr.bf16.mxu0 0
        %1661 = vmatpush1.bf16.msra.mxu0 0
        %1662 = vmatprep.subr.bf16.mxu0 0
        %1663 = vmatpush1.bf16.msra.mxu0 0
        %1664 = vmatprep.subr.bf16.mxu0 0
        %1665 = vmatpush1.bf16.msra.mxu0 0
        %1666 = vmatprep.subr.bf16.mxu0 0
        %1667 = vmatpush1.bf16.msra.mxu0 0
        %1668 = vmatprep.subr.bf16.mxu0 0
        %1669 = vmatpush1.bf16.msra.mxu0 0
        %1670 = vmatprep.subr.bf16.mxu0 0
        %1671 = vmatpush1.bf16.msra.mxu0 0
        %1672 = vmatprep.subr.bf16.mxu0 0
        %1673 = vmatpush1.bf16.msra.mxu0 0
        %1674 = vmatprep.subr.bf16.mxu0 0
        %1675 = vmatpush1.bf16.msra.mxu0 0
        %1676 = vmatprep.subr.bf16.mxu0 0
        %1677 = vmatpush1.bf16.msra.mxu0 0
        %1678 = vmatprep.mubr.bf16.mxu0 0
        %1679 = vmatmul.mubr.bf16.gmra.mrb[0].mxu0 %v1521
        %v1680 = vpop.f32.mrb[0].mxu0
        %v1681 = vadd.f32 %v1518, %v1680
        %v1682 = vpop.f32.mrb[0].mxu0
        %v1683 = vadd.f32 %v1518, %v1682
        %v1684 = vpop.f32.mrb[0].mxu0
        %v1685 = vpop.f32.mrb[0].mxu0
        %1686 = vdwg.mxu0
        %1687 = vmatprep.subr.bf16.mxu0 %v1500
        %1688 = vmatpush1.bf16.msra.mxu0 %v1499
        %1689 = vmatprep.subr.bf16.mxu0 %v1512
        %1690 = vmatpush1.bf16.msra.mxu0 %v1511
        %1691 = vmatprep.subr.bf16.mxu0 0
        %1692 = vmatpush1.bf16.msra.mxu0 0
        %1693 = vmatprep.subr.bf16.mxu0 0
        %1694 = vmatpush1.bf16.msra.mxu0 0
        %1695 = vmatprep.subr.bf16.mxu0 0
        %1696 = vmatpush1.bf16.msra.mxu0 0
        %1697 = vmatprep.subr.bf16.mxu0 0
        %1698 = vmatpush1.bf16.msra.mxu0 0
        %1699 = vmatprep.subr.bf16.mxu0 0
        %1700 = vmatpush1.bf16.msra.mxu0 0
        %1701 = vmatprep.subr.bf16.mxu0 0
        %1702 = vmatpush1.bf16.msra.mxu0 0
        %1703 = vmatprep.subr.bf16.mxu0 0
        %1704 = vmatpush1.bf16.msra.mxu0 0
        %1705 = vmatprep.subr.bf16.mxu0 0
        %1706 = vmatpush1.bf16.msra.mxu0 0
        %1707 = vmatprep.subr.bf16.mxu0 0
        %1708 = vmatpush1.bf16.msra.mxu0 0
        %1709 = vmatprep.subr.bf16.mxu0 0
        %1710 = vmatpush1.bf16.msra.mxu0 0
        %1711 = vmatprep.subr.bf16.mxu0 0
        %1712 = vmatpush1.bf16.msra.mxu0 0
        %1713 = vmatprep.subr.bf16.mxu0 0
        %1714 = vmatpush1.bf16.msra.mxu0 0
        %1715 = vmatprep.subr.bf16.mxu0 0
        %1716 = vmatpush1.bf16.msra.mxu0 0
        %1717 = vmatprep.subr.bf16.mxu0 0
        %1718 = vmatpush1.bf16.msra.mxu0 0
        %1719 = vmatprep.mubr.bf16.mxu0 0
        %1720 = vmatmul.mubr.bf16.gmra.mrb[0].mxu0 %v1521
        %v1721 = vpop.f32.mrb[0].mxu0
        %v1722 = vadd.f32 %v1518, %v1721
        %v1723 = vpop.f32.mrb[0].mxu0
        %v1724 = vadd.f32 %v1518, %v1723
        %v1725 = vpop.f32.mrb[0].mxu0
        %v1726 = vpop.f32.mrb[0].mxu0
        %1727 = vdwg.mxu0
        %1728 = vmatprep.subr.bf16.mxu0 %v1502
        %1729 = vmatpush1.bf16.msra.mxu0 %v1501
        %1730 = vmatprep.subr.bf16.mxu0 %v1514
        %1731 = vmatpush1.bf16.msra.mxu0 %v1513
        %1732 = vmatprep.subr.bf16.mxu0 0
        %1733 = vmatpush1.bf16.msra.mxu0 0
        %1734 = vmatprep.subr.bf16.mxu0 0
        %1735 = vmatpush1.bf16.msra.mxu0 0
        %1736 = vmatprep.subr.bf16.mxu0 0
        %1737 = vmatpush1.bf16.msra.mxu0 0
        %1738 = vmatprep.subr.bf16.mxu0 0
        %1739 = vmatpush1.bf16.msra.mxu0 0
        %1740 = vmatprep.subr.bf16.mxu0 0
        %1741 = vmatpush1.bf16.msra.mxu0 0
        %1742 = vmatprep.subr.bf16.mxu0 0
        %1743 = vmatpush1.bf16.msra.mxu0 0
        %1744 = vmatprep.subr.bf16.mxu0 0
        %1745 = vmatpush1.bf16.msra.mxu0 0
        %1746 = vmatprep.subr.bf16.mxu0 0
        %1747 = vmatpush1.bf16.msra.mxu0 0
        %1748 = vmatprep.subr.bf16.mxu0 0
        %1749 = vmatpush1.bf16.msra.mxu0 0
        %1750 = vmatprep.subr.bf16.mxu0 0
        %1751 = vmatpush1.bf16.msra.mxu0 0
        %1752 = vmatprep.subr.bf16.mxu0 0
        %1753 = vmatpush1.bf16.msra.mxu0 0
        %1754 = vmatprep.subr.bf16.mxu0 0
        %1755 = vmatpush1.bf16.msra.mxu0 0
        %1756 = vmatprep.subr.bf16.mxu0 0
        %1757 = vmatpush1.bf16.msra.mxu0 0
        %1758 = vmatprep.subr.bf16.mxu0 0
        %1759 = vmatpush1.bf16.msra.mxu0 0
        %1760 = vmatprep.mubr.bf16.mxu0 0
        %1761 = vmatmul.mubr.bf16.gmra.mrb[0].mxu0 %v1521
        %v1762 = vpop.f32.mrb[0].mxu0
        %v1763 = vadd.f32 %v1518, %v1762
        %v1764 = vpop.f32.mrb[0].mxu0
        %v1765 = vadd.f32 %v1518, %v1764
        %v1766 = vpop.f32.mrb[0].mxu0
        %v1767 = vpop.f32.mrb[0].mxu0
        %1768 = vdwg.mxu0
        %v1769 = vmul.f32 %v298, 2.0
        %v1770 = vmul.f32 %v299, 2.0
        %v1771 = vmul.f32 %v300, 2.0
        %v1772 = vmul.f32 %v301, 2.0
        %v1773 = vmul.f32 %v302, 2.0
        %v1774 = vmul.f32 %v303, 2.0
        %v1775 = vadd.f32 %v1769, -1.0
        %v1776 = vadd.f32 %v1770, -1.0
        %v1777 = vadd.f32 %v1771, -1.0
        %v1778 = vadd.f32 %v1772, -1.0
        %v1779 = vadd.f32 %v1773, -1.0
        %v1780 = vadd.f32 %v1774, -1.0
        %v1787 = vcombine.high %v1775, %v1775
        %v1788 = vcombine.high %v1776, %v1776
        %v1789 = vcombine.high %v1777, %v1777
        %v1790 = vcombine.high %v1778, %v1778
        %v1791 = vcombine.high %v1779, %v1779
        %v1792 = vcombine.high %v1780, %v1780
        %1799 = vst [vmem:[%s294] sm:$0x7] %v1775
        %1800 = vst [vmem:[%s294 + $0x8] sm:$0x7] %v1787
        %1801 = vst [vmem:[%s294 + $0x10] sm:$0x7] %v1776
        %1802 = vst [vmem:[%s294 + $0x18] sm:$0x7] %v1788
        %1803 = vst [vmem:[%s294 + $0x20] sm:$0x7] %v1777
        %1804 = vst [vmem:[%s294 + $0x28] sm:$0x7] %v1789
        %1805 = vst [vmem:[%s294 + $0x30] sm:$0x7] %v1778
        %1806 = vst [vmem:[%s294 + $0x38] sm:$0x7] %v1790
        %1807 = vst [vmem:[%s294 + $0x40] sm:$0x7] %v1779
        %1808 = vst [vmem:[%s294 + $0x48] sm:$0x7] %v1791
        %1809 = vst [vmem:[%s294 + $0x50] sm:$0x7] %v1780
        %1810 = vst [vmem:[%s294 + $0x58] sm:$0x7] %v1792
        %v1823 = vrot.slane %v1558, 5
        %v1824 = vrot.slane %v1560, 5
        %v1825 = vrot.slane %v1599, 5
        %v1826 = vrot.slane %v1601, 5
        %v1827 = vrot.slane %v1640, 5
        %v1828 = vrot.slane %v1642, 5
        %v1829 = vrot.slane %v1681, 5
        %v1830 = vrot.slane %v1683, 5
        %v1831 = vrot.slane %v1722, 5
        %v1832 = vrot.slane %v1724, 5
        %v1833 = vrot.slane %v1763, 5
        %v1834 = vrot.slane %v1765, 5
        %1847 = vst [vmem:[%s294] sm:$0x78] %v1823
        %1848 = vst [vmem:[%s294 + $0x8] sm:$0x78] %v1824
        %1849 = vst [vmem:[%s294 + $0x10] sm:$0x78] %v1825
        %1850 = vst [vmem:[%s294 + $0x18] sm:$0x78] %v1826
        %1851 = vst [vmem:[%s294 + $0x20] sm:$0x78] %v1827
        %1852 = vst [vmem:[%s294 + $0x28] sm:$0x78] %v1828
        %1853 = vst [vmem:[%s294 + $0x30] sm:$0x78] %v1829
        %1854 = vst [vmem:[%s294 + $0x38] sm:$0x78] %v1830
        %1855 = vst [vmem:[%s294 + $0x40] sm:$0x78] %v1831
        %1856 = vst [vmem:[%s294 + $0x48] sm:$0x78] %v1832
        %1857 = vst [vmem:[%s294 + $0x50] sm:$0x78] %v1833
        %1858 = vst [vmem:[%s294 + $0x58] sm:$0x78] %v1834
        %s1859 = sand.u32 %s184, 1
        %s1860 = scalar_lea.sflag [#allocation4], %s1859
        %s1861 = sand.u32 %s184, 1
        %s1862 = smul.addr %s1861, 96
        %s1863 = scalar_lea.vmem [#allocation5], %s1862
        // Predicated region
        $region53: #{tpu_custom_call.1} parent=47 // pred_check
          %p1864 = pneg %p194
        $region54: #{tpu_custom_call.1} parent=47 // pred_check_branch
          %1866 = sbr.rel (%p1864) target = $region56
        $region55: #{tpu_custom_call.1} parent=47 // pred_region
          %s1867 = smul.u32 12, %s24
          %s1869 = ssub.s32 1536, 1536
          %1870 = vsyncadd %s1860, %s1869
          %s1871 = smul.addr %s1867, 128
          %s1872 = scalar_lea.hbm %s7, %s1871
          %s1874 = sshll.u32 %s1863, 4
          %s1875 = int_to_ptr.vmem [resolvable:$true] %s1874
          %1877 = dma.vmem_to_hbm [thread:$0]  %s1875, 1536, %s1872, %s1860
        $region56: #{tpu_custom_call.1} parent=47 // pred_fallthru
          _
      $region48: #{tpu_custom_call.1} parent=5 // pred_fallthru
        _
      %p1878 = scmp.le.s32.totalorder 2, %s19
      // Predicated region
      $region57: #{tpu_custom_call.1} parent=5 // pred_check
        %p1879 = pneg %p1878
      $region58: #{tpu_custom_call.1} parent=5 // pred_check_branch
        %1881 = sbr.rel (%p1879) target = $region60
      $region59: #{tpu_custom_call.1} parent=5 // pred_region
        %s1882 = ssub.s32 %s19, 2
        // Predicated region
        $region61: #{tpu_custom_call.1} parent=59 // pred_check
          %p1883 = pneg %p200
        $region62: #{tpu_custom_call.1} parent=59 // pred_check_branch
          %1885 = sbr.rel (%p1883) target = $region64
        $region63: #{tpu_custom_call.1} parent=59 // pred_region
          %s1886 = sand.u32 %s185, 1
          %s1887 = scalar_lea.sflag [#allocation4], %s1886
          %s1888 = sand.u32 %s185, 1
          %s1889 = smul.addr %s1888, 96
          %s1890 = scalar_lea.vmem [#allocation5], %s1889
          %1891 = dma.done %s1887, 1536
        $region64: #{tpu_custom_call.1} parent=59 // pred_fallthru
          _
      $region60: #{tpu_custom_call.1} parent=5 // pred_fallthru
        _
    $region6: #{tpu_custom_call.1} parent=1 // loop_footer
      %s23 = sadd.s32 1, %s19
    $region7: #{tpu_custom_call.1} parent=1 // loop_footer_branch
      %18 = sbr.rel target = $region3
    $region8: #{tpu_custom_call.1} parent=1 // loop_exit
      _
    %1892 = vsyncpa [#allocation3], 1
    %s1893 = scalar_lea.sflag [#allocation3], 1
    %1894 = vsyncpa %s1893, 1
    %1895 = vsyncpa [#allocation4], 1
    %s1896 = scalar_lea.sflag [#allocation4], 1
    %1897 = vsyncpa %s1896, 1

</llo_original>
